<compile_context>
chip_gen: v7x
topology: tpu7x:2x2x1
jax: 0.10.0
libtpu: 0.0.40
codegen_flags: <defaults>
</compile_context>

<pallas_src>
import math

import jax
import jax.numpy as jnp
from jax import lax
from jax.experimental import pallas as pl
from jax.experimental.pallas import tpu as pltpu

BATCH = 16      # raised from 2 so the recurrent matmul fills MXU rows
SEQ = 8         # original: 254
FEAT = 16       # original: 39
HID = 128       # original: 1024 (lane-dense)
FC1 = 32        # original: 100 (logical)
NCLASS = 10     # original: 10  (logical)

FC1_P = 128     # FC1 padded to full lane width
NCLASS_P = 128  # classes padded to full lane width
BB = BATCH      # batch block: whole batch on one core (set 8 on v7x megacore)
UNROLL = SEQ    # timesteps per grid step (collapses time grid at demo dims)

NEG_INF = -1e30  # fc2-bias pad value so padded classes vanish in log_softmax


# ---------------------------------------------------------------------------
# Fused kernel: input projection + recurrence + batched fc1 fold + epilogue.
# grid = (BATCH//BB, SEQ//UNROLL); h and the fc1 accumulator live in VMEM
# scratch carried across the (arbitrary) time axis of each batch block.
# ---------------------------------------------------------------------------
def rnn_fused_kernel(x_ref, h0_ref, wih_ref, brnn_ref, whh_ref,
                     w1_ref, b1_ref, w2_ref, b2_ref,
                     out_ref, h_scr, acc_scr):
    t = pl.program_id(1)

    @pl.when(t == 0)
    def _():
        h_scr[...] = h0_ref[...]
        acc_scr[...] = jnp.zeros_like(acc_scr)

    wih = wih_ref[...]                      # (FEAT, HID)   bf16, resident
    brnn = brnn_ref[...]                    # (1, HID)      f32
    whh = whh_ref[...]                      # (HID, HID)    bf16, resident

    # Single bf16 cast of the carried state, reused for the W_hh dot.
    h = h_scr[...]                          # (BB, HID) f32
    h_bf = h.astype(jnp.bfloat16)

    hs = []
    for u in range(UNROLL):
        # Fused input projection: tiny K=FEAT matmul, independent of h, so it
        # schedules off the serial tanh->matmul chain.
        pre_t = jnp.dot(x_ref[u].astype(jnp.bfloat16), wih,
                        preferred_element_type=jnp.float32) + brnn
        h = jnp.tanh(pre_t + jnp.dot(h_bf, whh,
                                     preferred_element_type=jnp.float32))
        h_bf = h.astype(jnp.bfloat16)       # one cast per step, reused below
        hs.append(h_bf)
    h_scr[...] = h

    # fc1 fold, off the critical path: ONE K = UNROLL*HID matmul per block
    # against the streamed w1 block (pre-reshaped to (SEQ//UNROLL, UNROLL*HID, FC1_P)).
    h_blk = jnp.concatenate(hs, axis=-1)    # (BB, UNROLL*HID) bf16
    acc_scr[...] += jnp.dot(h_blk, w1_ref[0],
                            preferred_element_type=jnp.float32)

    @pl.when(t == pl.num_programs(1) - 1)
    def _():
        fc1 = jnp.maximum(acc_scr[...] + b1_ref[...], 0.0)      # ReLU(fc1)
        # bf16 operands / f32 accumulation for the logits matmul; bias add and
        # softmax math stay f32 (keeps the -1e30 class padding exact).
        logits = jnp.dot(fc1.astype(jnp.bfloat16), w2_ref[...],
                         preferred_element_type=jnp.float32) + b2_ref[...]
        m = jnp.max(logits, axis=-1, keepdims=True)
        z = logits - m
        lse = jnp.log(jnp.sum(jnp.exp(z), axis=-1, keepdims=True))
        out_ref[...] = z - lse


def tidigits_rnn_forward(x, kp, h0, *, bb=BB):
    """x: (BATCH, SEQ, FEAT) f32, kp: padded/cast kernel params, h0: (BATCH, HID)."""
    b = x.shape[0]
    # Time-major view (mirrors x.permute([1,0,2])); tiny (FEAT << HID) and lets
    # the kernel index timesteps along the leading block axis.
    x_tbf = jnp.transpose(x, (1, 0, 2))                 # (SEQ, B, FEAT)

    grid = (b // bb, SEQ // UNROLL)
    out_p = pl.pallas_call(
        rnn_fused_kernel,
        out_shape=jax.ShapeDtypeStruct((b, NCLASS_P), jnp.float32),
        grid_spec=pltpu.PrefetchScalarGridSpec(
            num_scalar_prefetch=0,
            grid=grid,
            in_specs=[
                pl.BlockSpec((UNROLL, bb, FEAT), lambda bi, t: (t, bi, 0)),   # x (streamed)
                pl.BlockSpec((bb, HID), lambda bi, t: (bi, 0)),               # h0
                pl.BlockSpec((FEAT, HID), lambda bi, t: (0, 0)),              # W_ih (resident)
                pl.BlockSpec((1, HID), lambda bi, t: (0, 0)),                 # b_ih + b_hh
                pl.BlockSpec((HID, HID), lambda bi, t: (0, 0)),               # W_hh (resident)
                pl.BlockSpec((1, UNROLL * HID, FC1_P),
                             lambda bi, t: (t, 0, 0)),                        # w1 (streamed)
                pl.BlockSpec((1, FC1_P), lambda bi, t: (0, 0)),               # b1
                pl.BlockSpec((FC1_P, NCLASS_P), lambda bi, t: (0, 0)),        # w2
                pl.BlockSpec((1, NCLASS_P), lambda bi, t: (0, 0)),            # b2
            ],
            # NOTE: at original dims (HID=1024, SEQ=254) keep w1 streamed (resident
            # would exceed v7x's 64 MiB VMEM) and consider pipeline_mode=pl.Buffered(1)
            # on the constant-index inputs to skip their useless second buffers.
            out_specs=pl.BlockSpec((bb, NCLASS_P), lambda bi, t: (bi, 0)),
            scratch_shapes=[
                pltpu.VMEM((bb, HID), jnp.float32),     # hidden state carry
                pltpu.VMEM((bb, FC1_P), jnp.float32),   # fc1 accumulator
            ]),
        compiler_params=pltpu.CompilerParams(
            dimension_semantics=("parallel", "arbitrary")),
    )(x_tbf, h0, kp["w_ih"], kp["b_rnn"], kp["w_hh"],
      kp["w1"], kp["b1"], kp["w2"], kp["b2"])
    return out_p[:, :NCLASS]


def ref_forward(x, p, h0):
    """Pure-JAX (f32, HIGHEST precision) reference mirroring the PyTorch forward."""
    hp = lax.Precision.HIGHEST
    xt = jnp.transpose(x, (1, 0, 2))                    # (SEQ, B, FEAT)

    def step(h, x_t):
        h = jnp.tanh(jnp.dot(x_t, p["w_ih"], precision=hp)
                     + jnp.dot(h, p["w_hh"], precision=hp)
                     + p["b_rnn"])
        return h, h

    _, hs = lax.scan(step, h0, xt)                      # (SEQ, B, HID)
    flat = jnp.transpose(hs, (1, 0, 2)).reshape(x.shape[0], -1)   # (B, SEQ*HID)
    fc1 = jnp.maximum(jnp.dot(flat, p["w1"], precision=hp) + p["b1"], 0.0)
    logits = jnp.dot(fc1, p["w2"], precision=hp) + p["b2"]
    return jax.nn.log_softmax(logits, axis=-1)


def make_kernel_params(p):
    """Pad to lane-dense shapes, reshape w1 per time block, cast weights to bf16."""
    w1 = p["w1"].reshape(SEQ, HID, FC1)                              # row = t*HID + j
    w1 = jnp.pad(w1, ((0, 0), (0, 0), (0, FC1_P - FC1)))             # zero pad FC1
    w1 = w1.reshape(SEQ // UNROLL, UNROLL * HID, FC1_P)              # per time block
    b1 = jnp.pad(p["b1"], ((0, 0), (0, FC1_P - FC1)))                # zero pad
    w2 = jnp.pad(p["w2"], ((0, FC1_P - FC1), (0, NCLASS_P - NCLASS)))
    b2 = jnp.pad(p["b2"], ((0, 0), (0, NCLASS_P - NCLASS)),
                 constant_values=NEG_INF)                            # kill padded classes
    return dict(
        w_ih=p["w_ih"].astype(jnp.bfloat16),
        b_rnn=p["b_rnn"],                       # f32 bias add
        w_hh=p["w_hh"].astype(jnp.bfloat16),
        w1=w1.astype(jnp.bfloat16),
        b1=b1,                                  # f32
        w2=w2.astype(jnp.bfloat16),
        b2=b2,                                  # f32 (carries -1e30 padding)
    )


if __name__ == "__main__":
    key = jax.random.PRNGKey(0)
    keys = jax.random.split(key, 10)

    def u(k, shape, bound):
        return jax.random.uniform(k, shape, jnp.float32, -bound, bound)

    k_rnn = 1.0 / math.sqrt(HID)
    k_fc1 = 1.0 / math.sqrt(SEQ * HID)
    k_fc2 = 1.0 / math.sqrt(FC1)

    # Logical (unpadded, f32) parameters; weights stored already-transposed
    # so the kernel computes x @ W + b.
    params = dict(
        w_ih=u(keys[0], (FEAT, HID), k_rnn),
        w_hh=u(keys[1], (HID, HID), k_rnn),
        b_rnn=u(keys[2], (1, HID), k_rnn) + u(keys[3], (1, HID), k_rnn),  # b_ih + b_hh
        w1=u(keys[4], (SEQ * HID, FC1), k_fc1),
        b1=u(keys[5], (1, FC1), k_fc1),
        w2=u(keys[6], (FC1, NCLASS), k_fc2),
        b2=u(keys[7], (1, NCLASS), k_fc2),
    )
    kparams = make_kernel_params(params)

    x = jax.random.normal(keys[8], (BATCH, SEQ, FEAT), jnp.float32)
    h0 = jax.random.uniform(keys[9], (BATCH, HID), jnp.float32)

    out = jax.block_until_ready(tidigits_rnn_forward(x, kparams, h0))
    ref = jax.block_until_ready(ref_forward(x, params, h0))

    assert out.shape == (BATCH, NCLASS)
    # bf16 matmul operands (f32 accumulation) vs f32 HIGHEST reference: expected
    # log-prob error is O(1e-2) over the recurrence, bounded by tanh saturation.
    assert jnp.allclose(out, ref, atol=5e-2, rtol=5e-2), (out, ref)
    print("KERNEL_OK")
</pallas_src>

<mosaic_0001>
module attributes {stable_mosaic.version = 11 : i64} {
  func.func @rnn_fused_kernel(%arg0: i32, %arg1: i32, %arg2: memref<8x16x16xf32, #tpu.memory_space<vmem>>, %arg3: memref<16x128xf32, #tpu.memory_space<vmem>>, %arg4: memref<16x128xbf16, #tpu.memory_space<vmem>>, %arg5: memref<1x128xf32, #tpu.memory_space<vmem>>, %arg6: memref<128x128xbf16, #tpu.memory_space<vmem>>, %arg7: memref<1x1024x128xbf16, #tpu.memory_space<vmem>>, %arg8: memref<1x128xf32, #tpu.memory_space<vmem>>, %arg9: memref<128x128xbf16, #tpu.memory_space<vmem>>, %arg10: memref<1x128xf32, #tpu.memory_space<vmem>>, %arg11: memref<16x128xf32, #tpu.memory_space<vmem>>, %arg12: memref<16x128xf32, #tpu.memory_space<vmem>>, %arg13: memref<16x128xf32, #tpu.memory_space<vmem>>) attributes {dimension_semantics = [#tpu.dimension_semantics<parallel>, #tpu.dimension_semantics<arbitrary>], iteration_bounds = array<i64: 1, 1>, scalar_prefetch = 0 : i64, scratch_operands = 2 : i64, tpu.core_type = #tpu.core_type<tc>, window_params = [{transform_indices = @transform_0, window_bounds = array<i64: 8, 16, 16>}, {transform_indices = @transform_1, window_bounds = array<i64: 16, 128>}, {pipeline_mode = #tpu.pipeline_mode<synchronous>, transform_indices = @transform_2, window_bounds = array<i64: 16, 128>}, {pipeline_mode = #tpu.pipeline_mode<synchronous>, transform_indices = @transform_3, window_bounds = array<i64: 1, 128>}, {pipeline_mode = #tpu.pipeline_mode<synchronous>, transform_indices = @transform_4, window_bounds = array<i64: 128, 128>}, {transform_indices = @transform_5, window_bounds = array<i64: 1, 1024, 128>}, {pipeline_mode = #tpu.pipeline_mode<synchronous>, transform_indices = @transform_6, window_bounds = array<i64: 1, 128>}, {pipeline_mode = #tpu.pipeline_mode<synchronous>, transform_indices = @transform_7, window_bounds = array<i64: 128, 128>}, {pipeline_mode = #tpu.pipeline_mode<synchronous>, transform_indices = @transform_8, window_bounds = array<i64: 1, 128>}, {transform_indices = @transform_9, window_bounds = array<i64: 16, 128>}]} {
    %c0_i32 = arith.constant 0 : i32
    %0 = arith.cmpi eq, %arg1, %c0_i32 : i32
    %1 = arith.extui %0 : i1 to i32
    %c0_i32_0 = arith.constant 0 : i32
    %2 = arith.cmpi ne, %1, %c0_i32_0 : i32
    scf.if %2 {
      %c0_52 = arith.constant 0 : index
      %c0_53 = arith.constant 0 : index
      %99 = vector.load %arg3[%c0_52, %c0_53] : memref<16x128xf32, #tpu.memory_space<vmem>>, vector<16x128xf32>
      %c0_54 = arith.constant 0 : index
      %c0_55 = arith.constant 0 : index
      %100 = vector.load %arg12[%c0_54, %c0_55] : memref<16x128xf32, #tpu.memory_space<vmem>>, vector<16x128xf32>
      tpu.vector_store %arg12[%c0_54, %c0_55], %99 {strides = array<i32>} : memref<16x128xf32, #tpu.memory_space<vmem>>, vector<16x128xf32>,
      %cst_56 = arith.constant 0.000000e+00 : f32
      %101 = vector.broadcast %cst_56 : f32 to vector<16x128xf32>
      %c0_57 = arith.constant 0 : index
      %c0_58 = arith.constant 0 : index
      %102 = vector.load %arg13[%c0_57, %c0_58] : memref<16x128xf32, #tpu.memory_space<vmem>>, vector<16x128xf32>
      tpu.vector_store %arg13[%c0_57, %c0_58], %101 {strides = array<i32>} : memref<16x128xf32, #tpu.memory_space<vmem>>, vector<16x128xf32>,
    } else {
    }
    %c0 = arith.constant 0 : index
    %c0_1 = arith.constant 0 : index
    %3 = vector.load %arg4[%c0, %c0_1] : memref<16x128xbf16, #tpu.memory_space<vmem>>, vector<16x128xbf16>
    %c0_2 = arith.constant 0 : index
    %c0_3 = arith.constant 0 : index
    %4 = vector.load %arg5[%c0_2, %c0_3] : memref<1x128xf32, #tpu.memory_space<vmem>>, vector<1x128xf32>
    %c0_4 = arith.constant 0 : index
    %c0_5 = arith.constant 0 : index
    %5 = vector.load %arg6[%c0_4, %c0_5] : memref<128x128xbf16, #tpu.memory_space<vmem>>, vector<128x128xbf16>
    %c0_6 = arith.constant 0 : index
    %c0_7 = arith.constant 0 : index
    %6 = vector.load %arg12[%c0_6, %c0_7] : memref<16x128xf32, #tpu.memory_space<vmem>>, vector<16x128xf32>
    %7 = arith.truncf %6 : vector<16x128xf32> to vector<16x128xbf16>
    %c0_8 = arith.constant 0 : index
    %c0_9 = arith.constant 0 : index
    %c0_10 = arith.constant 0 : index
    %8 = vector.load %arg2[%c0_8, %c0_9, %c0_10] : memref<8x16x16xf32, #tpu.memory_space<vmem>>, vector<1x16x16xf32>
    %9 = vector.shape_cast %8 : vector<1x16x16xf32> to vector<16x16xf32>
    %10 = arith.truncf %9 : vector<16x16xf32> to vector<16x16xbf16>
    %cst = arith.constant dense<0.000000e+00> : vector<16x128xf32>
    %11 = tpu.matmul %10, %3, %cst {dimension_numbers = #tpu.dot_dimension_numbers<[1], [0], [0], [1], [0, 0, 1, 1], [], []>} : vector<16x16xbf16>, vector<16x128xbf16>, vector<16x128xf32> -> vector<16x128xf32>
    %12 = vector.broadcast %4 : vector<1x128xf32> to vector<16x128xf32>
    %13 = arith.addf %11, %12 : vector<16x128xf32>
    %cst_11 = arith.constant dense<0.000000e+00> : vector<16x128xf32>
    %14 = tpu.matmul %7, %5, %cst_11 {dimension_numbers = #tpu.dot_dimension_numbers<[1], [0], [0], [1], [0, 0, 1, 1], [], []>} : vector<16x128xbf16>, vector<128x128xbf16>, vector<16x128xf32> -> vector<16x128xf32>
    %15 = arith.addf %13, %14 : vector<16x128xf32>
    %16 = math.tanh %15 : vector<16x128xf32>
    %17 = arith.truncf %16 : vector<16x128xf32> to vector<16x128xbf16>
    %c1 = arith.constant 1 : index
    %c0_12 = arith.constant 0 : index
    %c0_13 = arith.constant 0 : index
    %18 = vector.load %arg2[%c1, %c0_12, %c0_13] : memref<8x16x16xf32, #tpu.memory_space<vmem>>, vector<1x16x16xf32>
    %19 = vector.shape_cast %18 : vector<1x16x16xf32> to vector<16x16xf32>
    %20 = arith.truncf %19 : vector<16x16xf32> to vector<16x16xbf16>
    %cst_14 = arith.constant dense<0.000000e+00> : vector<16x128xf32>
    %21 = tpu.matmul %20, %3, %cst_14 {dimension_numbers = #tpu.dot_dimension_numbers<[1], [0], [0], [1], [0, 0, 1, 1], [], []>} : vector<16x16xbf16>, vector<16x128xbf16>, vector<16x128xf32> -> vector<16x128xf32>
    %22 = vector.broadcast %4 : vector<1x128xf32> to vector<16x128xf32>
    %23 = arith.addf %21, %22 : vector<16x128xf32>
    %cst_15 = arith.constant dense<0.000000e+00> : vector<16x128xf32>
    %24 = tpu.matmul %17, %5, %cst_15 {dimension_numbers = #tpu.dot_dimension_numbers<[1], [0], [0], [1], [0, 0, 1, 1], [], []>} : vector<16x128xbf16>, vector<128x128xbf16>, vector<16x128xf32> -> vector<16x128xf32>
    %25 = arith.addf %23, %24 : vector<16x128xf32>
    %26 = math.tanh %25 : vector<16x128xf32>
    %27 = arith.truncf %26 : vector<16x128xf32> to vector<16x128xbf16>
    %c2 = arith.constant 2 : index
    %c0_16 = arith.constant 0 : index
    %c0_17 = arith.constant 0 : index
    %28 = vector.load %arg2[%c2, %c0_16, %c0_17] : memref<8x16x16xf32, #tpu.memory_space<vmem>>, vector<1x16x16xf32>
    %29 = vector.shape_cast %28 : vector<1x16x16xf32> to vector<16x16xf32>
    %30 = arith.truncf %29 : vector<16x16xf32> to vector<16x16xbf16>
    %cst_18 = arith.constant dense<0.000000e+00> : vector<16x128xf32>
    %31 = tpu.matmul %30, %3, %cst_18 {dimension_numbers = #tpu.dot_dimension_numbers<[1], [0], [0], [1], [0, 0, 1, 1], [], []>} : vector<16x16xbf16>, vector<16x128xbf16>, vector<16x128xf32> -> vector<16x128xf32>
    %32 = vector.broadcast %4 : vector<1x128xf32> to vector<16x128xf32>
    %33 = arith.addf %31, %32 : vector<16x128xf32>
    %cst_19 = arith.constant dense<0.000000e+00> : vector<16x128xf32>
    %34 = tpu.matmul %27, %5, %cst_19 {dimension_numbers = #tpu.dot_dimension_numbers<[1], [0], [0], [1], [0, 0, 1, 1], [], []>} : vector<16x128xbf16>, vector<128x128xbf16>, vector<16x128xf32> -> vector<16x128xf32>
    %35 = arith.addf %33, %34 : vector<16x128xf32>
    %36 = math.tanh %35 : vector<16x128xf32>
    %37 = arith.truncf %36 : vector<16x128xf32> to vector<16x128xbf16>
    %c3 = arith.constant 3 : index
    %c0_20 = arith.constant 0 : index
    %c0_21 = arith.constant 0 : index
    %38 = vector.load %arg2[%c3, %c0_20, %c0_21] : memref<8x16x16xf32, #tpu.memory_space<vmem>>, vector<1x16x16xf32>
    %39 = vector.shape_cast %38 : vector<1x16x16xf32> to vector<16x16xf32>
    %40 = arith.truncf %39 : vector<16x16xf32> to vector<16x16xbf16>
    %cst_22 = arith.constant dense<0.000000e+00> : vector<16x128xf32>
    %41 = tpu.matmul %40, %3, %cst_22 {dimension_numbers = #tpu.dot_dimension_numbers<[1], [0], [0], [1], [0, 0, 1, 1], [], []>} : vector<16x16xbf16>, vector<16x128xbf16>, vector<16x128xf32> -> vector<16x128xf32>
    %42 = vector.broadcast %4 : vector<1x128xf32> to vector<16x128xf32>
    %43 = arith.addf %41, %42 : vector<16x128xf32>
    %cst_23 = arith.constant dense<0.000000e+00> : vector<16x128xf32>
    %44 = tpu.matmul %37, %5, %cst_23 {dimension_numbers = #tpu.dot_dimension_numbers<[1], [0], [0], [1], [0, 0, 1, 1], [], []>} : vector<16x128xbf16>, vector<128x128xbf16>, vector<16x128xf32> -> vector<16x128xf32>
    %45 = arith.addf %43, %44 : vector<16x128xf32>
    %46 = math.tanh %45 : vector<16x128xf32>
    %47 = arith.truncf %46 : vector<16x128xf32> to vector<16x128xbf16>
    %c4 = arith.constant 4 : index
    %c0_24 = arith.constant 0 : index
    %c0_25 = arith.constant 0 : index
    %48 = vector.load %arg2[%c4, %c0_24, %c0_25] : memref<8x16x16xf32, #tpu.memory_space<vmem>>, vector<1x16x16xf32>
    %49 = vector.shape_cast %48 : vector<1x16x16xf32> to vector<16x16xf32>
    %50 = arith.truncf %49 : vector<16x16xf32> to vector<16x16xbf16>
    %cst_26 = arith.constant dense<0.000000e+00> : vector<16x128xf32>
    %51 = tpu.matmul %50, %3, %cst_26 {dimension_numbers = #tpu.dot_dimension_numbers<[1], [0], [0], [1], [0, 0, 1, 1], [], []>} : vector<16x16xbf16>, vector<16x128xbf16>, vector<16x128xf32> -> vector<16x128xf32>
    %52 = vector.broadcast %4 : vector<1x128xf32> to vector<16x128xf32>
    %53 = arith.addf %51, %52 : vector<16x128xf32>
    %cst_27 = arith.constant dense<0.000000e+00> : vector<16x128xf32>
    %54 = tpu.matmul %47, %5, %cst_27 {dimension_numbers = #tpu.dot_dimension_numbers<[1], [0], [0], [1], [0, 0, 1, 1], [], []>} : vector<16x128xbf16>, vector<128x128xbf16>, vector<16x128xf32> -> vector<16x128xf32>
    %55 = arith.addf %53, %54 : vector<16x128xf32>
    %56 = math.tanh %55 : vector<16x128xf32>
    %57 = arith.truncf %56 : vector<16x128xf32> to vector<16x128xbf16>
    %c5 = arith.constant 5 : index
    %c0_28 = arith.constant 0 : index
    %c0_29 = arith.constant 0 : index
    %58 = vector.load %arg2[%c5, %c0_28, %c0_29] : memref<8x16x16xf32, #tpu.memory_space<vmem>>, vector<1x16x16xf32>
    %59 = vector.shape_cast %58 : vector<1x16x16xf32> to vector<16x16xf32>
    %60 = arith.truncf %59 : vector<16x16xf32> to vector<16x16xbf16>
    %cst_30 = arith.constant dense<0.000000e+00> : vector<16x128xf32>
    %61 = tpu.matmul %60, %3, %cst_30 {dimension_numbers = #tpu.dot_dimension_numbers<[1], [0], [0], [1], [0, 0, 1, 1], [], []>} : vector<16x16xbf16>, vector<16x128xbf16>, vector<16x128xf32> -> vector<16x128xf32>
    %62 = vector.broadcast %4 : vector<1x128xf32> to vector<16x128xf32>
    %63 = arith.addf %61, %62 : vector<16x128xf32>
    %cst_31 = arith.constant dense<0.000000e+00> : vector<16x128xf32>
    %64 = tpu.matmul %57, %5, %cst_31 {dimension_numbers = #tpu.dot_dimension_numbers<[1], [0], [0], [1], [0, 0, 1, 1], [], []>} : vector<16x128xbf16>, vector<128x128xbf16>, vector<16x128xf32> -> vector<16x128xf32>
    %65 = arith.addf %63, %64 : vector<16x128xf32>
    %66 = math.tanh %65 : vector<16x128xf32>
    %67 = arith.truncf %66 : vector<16x128xf32> to vector<16x128xbf16>
    %c6 = arith.constant 6 : index
    %c0_32 = arith.constant 0 : index
    %c0_33 = arith.constant 0 : index
    %68 = vector.load %arg2[%c6, %c0_32, %c0_33] : memref<8x16x16xf32, #tpu.memory_space<vmem>>, vector<1x16x16xf32>
    %69 = vector.shape_cast %68 : vector<1x16x16xf32> to vector<16x16xf32>
    %70 = arith.truncf %69 : vector<16x16xf32> to vector<16x16xbf16>
    %cst_34 = arith.constant dense<0.000000e+00> : vector<16x128xf32>
    %71 = tpu.matmul %70, %3, %cst_34 {dimension_numbers = #tpu.dot_dimension_numbers<[1], [0], [0], [1], [0, 0, 1, 1], [], []>} : vector<16x16xbf16>, vector<16x128xbf16>, vector<16x128xf32> -> vector<16x128xf32>
    %72 = vector.broadcast %4 : vector<1x128xf32> to vector<16x128xf32>
    %73 = arith.addf %71, %72 : vector<16x128xf32>
    %cst_35 = arith.constant dense<0.000000e+00> : vector<16x128xf32>
    %74 = tpu.matmul %67, %5, %cst_35 {dimension_numbers = #tpu.dot_dimension_numbers<[1], [0], [0], [1], [0, 0, 1, 1], [], []>} : vector<16x128xbf16>, vector<128x128xbf16>, vector<16x128xf32> -> vector<16x128xf32>
    %75 = arith.addf %73, %74 : vector<16x128xf32>
    %76 = math.tanh %75 : vector<16x128xf32>
    %77 = arith.truncf %76 : vector<16x128xf32> to vector<16x128xbf16>
    %c7 = arith.constant 7 : index
    %c0_36 = arith.constant 0 : index
    %c0_37 = arith.constant 0 : index
    %78 = vector.load %arg2[%c7, %c0_36, %c0_37] : memref<8x16x16xf32, #tpu.memory_space<vmem>>, vector<1x16x16xf32>
    %79 = vector.shape_cast %78 : vector<1x16x16xf32> to vector<16x16xf32>
    %80 = arith.truncf %79 : vector<16x16xf32> to vector<16x16xbf16>
    %cst_38 = arith.constant dense<0.000000e+00> : vector<16x128xf32>
    %81 = tpu.matmul %80, %3, %cst_38 {dimension_numbers = #tpu.dot_dimension_numbers<[1], [0], [0], [1], [0, 0, 1, 1], [], []>} : vector<16x16xbf16>, vector<16x128xbf16>, vector<16x128xf32> -> vector<16x128xf32>
    %82 = vector.broadcast %4 : vector<1x128xf32> to vector<16x128xf32>
    %83 = arith.addf %81, %82 : vector<16x128xf32>
    %cst_39 = arith.constant dense<0.000000e+00> : vector<16x128xf32>
    %84 = tpu.matmul %77, %5, %cst_39 {dimension_numbers = #tpu.dot_dimension_numbers<[1], [0], [0], [1], [0, 0, 1, 1], [], []>} : vector<16x128xbf16>, vector<128x128xbf16>, vector<16x128xf32> -> vector<16x128xf32>
    %85 = arith.addf %83, %84 : vector<16x128xf32>
    %86 = math.tanh %85 : vector<16x128xf32>
    %87 = arith.truncf %86 : vector<16x128xf32> to vector<16x128xbf16>
    %c0_40 = arith.constant 0 : index
    %c0_41 = arith.constant 0 : index
    %88 = vector.load %arg12[%c0_40, %c0_41] : memref<16x128xf32, #tpu.memory_space<vmem>>, vector<16x128xf32>
    tpu.vector_store %arg12[%c0_40, %c0_41], %86 {strides = array<i32>} : memref<16x128xf32, #tpu.memory_space<vmem>>, vector<16x128xf32>,
    %89 = tpu.concatenate %17, %27, %37, %47, %57, %67, %77, %87 in 1 : vector<16x128xbf16>, vector<16x128xbf16>, vector<16x128xbf16>, vector<16x128xbf16>, vector<16x128xbf16>, vector<16x128xbf16>, vector<16x128xbf16>, vector<16x128xbf16> -> vector<16x1024xbf16>
    %c0_42 = arith.constant 0 : index
    %c0_43 = arith.constant 0 : index
    %90 = vector.load %arg13[%c0_42, %c0_43] : memref<16x128xf32, #tpu.memory_space<vmem>>, vector<16x128xf32>
    %c0_44 = arith.constant 0 : index
    %c0_45 = arith.constant 0 : index
    %c0_46 = arith.constant 0 : index
    %91 = vector.load %arg7[%c0_44, %c0_45, %c0_46] : memref<1x1024x128xbf16, #tpu.memory_space<vmem>>, vector<1x1024x128xbf16>
    %92 = vector.shape_cast %91 : vector<1x1024x128xbf16> to vector<1024x128xbf16>
    %cst_47 = arith.constant dense<0.000000e+00> : vector<16x128xf32>
    %93 = tpu.matmul %89, %92, %cst_47 {dimension_numbers = #tpu.dot_dimension_numbers<[1], [0], [0], [1], [0, 0, 1, 1], [], []>} : vector<16x1024xbf16>, vector<1024x128xbf16>, vector<16x128xf32> -> vector<16x128xf32>
    %94 = arith.addf %90, %93 : vector<16x128xf32>
    %c0_48 = arith.constant 0 : index
    %c0_49 = arith.constant 0 : index
    %95 = vector.load %arg13[%c0_48, %c0_49] : memref<16x128xf32, #tpu.memory_space<vmem>>, vector<16x128xf32>
    tpu.vector_store %arg13[%c0_48, %c0_49], %94 {strides = array<i32>} : memref<16x128xf32, #tpu.memory_space<vmem>>, vector<16x128xf32>,
    %c0_i32_50 = arith.constant 0 : i32
    %96 = arith.cmpi eq, %arg1, %c0_i32_50 : i32
    %97 = arith.extui %96 : i1 to i32
    %c0_i32_51 = arith.constant 0 : i32
    %98 = arith.cmpi ne, %97, %c0_i32_51 : i32
    scf.if %98 {
      %c0_52 = arith.constant 0 : index
      %c0_53 = arith.constant 0 : index
      %99 = vector.load %arg13[%c0_52, %c0_53] : memref<16x128xf32, #tpu.memory_space<vmem>>, vector<16x128xf32>
      %c0_54 = arith.constant 0 : index
      %c0_55 = arith.constant 0 : index
      %100 = vector.load %arg8[%c0_54, %c0_55] : memref<1x128xf32, #tpu.memory_space<vmem>>, vector<1x128xf32>
      %101 = vector.broadcast %100 : vector<1x128xf32> to vector<16x128xf32>
      %102 = arith.addf %99, %101 : vector<16x128xf32>
      %cst_56 = arith.constant 0.000000e+00 : f32
      %103 = vector.broadcast %cst_56 : f32 to vector<16x128xf32>
      %104 = arith.maximumf %102, %103 : vector<16x128xf32>
      %105 = arith.truncf %104 : vector<16x128xf32> to vector<16x128xbf16>
      %c0_57 = arith.constant 0 : index
      %c0_58 = arith.constant 0 : index
      %106 = vector.load %arg9[%c0_57, %c0_58] : memref<128x128xbf16, #tpu.memory_space<vmem>>, vector<128x128xbf16>
      %cst_59 = arith.constant dense<0.000000e+00> : vector<16x128xf32>
      %107 = tpu.matmul %105, %106, %cst_59 {dimension_numbers = #tpu.dot_dimension_numbers<[1], [0], [0], [1], [0, 0, 1, 1], [], []>} : vector<16x128xbf16>, vector<128x128xbf16>, vector<16x128xf32> -> vector<16x128xf32>
      %c0_60 = arith.constant 0 : index
      %c0_61 = arith.constant 0 : index
      %108 = vector.load %arg10[%c0_60, %c0_61] : memref<1x128xf32, #tpu.memory_space<vmem>>, vector<1x128xf32>
      %109 = vector.broadcast %108 : vector<1x128xf32> to vector<16x128xf32>
      %110 = arith.addf %107, %109 : vector<16x128xf32>
      %cst_62 = arith.constant dense<0xFF800000> : vector<16xf32>
      %111 = vector.multi_reduction <maximumf>, %110, %cst_62 [1] : vector<16x128xf32> to vector<16xf32>
      %112 = vector.shape_cast %111 : vector<16xf32> to vector<16x1xf32>
      %113 = vector.broadcast %112 : vector<16x1xf32> to vector<16x128xf32>
      %114 = arith.subf %110, %113 : vector<16x128xf32>
      %115 = math.exp %114 : vector<16x128xf32>
      %cst_63 = arith.constant dense<0.000000e+00> : vector<16xf32>
      %116 = vector.multi_reduction <add>, %115, %cst_63 [1] : vector<16x128xf32> to vector<16xf32>
      %117 = vector.shape_cast %116 : vector<16xf32> to vector<16x1xf32>
      %118 = math.log %117 : vector<16x1xf32>
      %119 = vector.broadcast %118 : vector<16x1xf32> to vector<16x128xf32>
      %120 = arith.subf %114, %119 : vector<16x128xf32>
      %c0_64 = arith.constant 0 : index
      %c0_65 = arith.constant 0 : index
      %121 = vector.load %arg11[%c0_64, %c0_65] : memref<16x128xf32, #tpu.memory_space<vmem>>, vector<16x128xf32>
      tpu.vector_store %arg11[%c0_64, %c0_65], %120 {strides = array<i32>} : memref<16x128xf32, #tpu.memory_space<vmem>>, vector<16x128xf32>,
    } else {
    }
    return
  }
  func.func @transform_0(%arg0: i32, %arg1: i32) -> (i32, i32, i32) {
    %c0_i32 = arith.constant 0 : i32
    %c0_i32_0 = arith.constant 0 : i32
    return %arg1, %arg0, %c0_i32 : i32, i32, i32
  }
  func.func @transform_1(%arg0: i32, %arg1: i32) -> (i32, i32) {
    %c0_i32 = arith.constant 0 : i32
    %c0_i32_0 = arith.constant 0 : i32
    return %arg0, %c0_i32 : i32, i32
  }
  func.func @transform_2(%arg0: i32, %arg1: i32) -> (i32, i32) {
    %c0_i32 = arith.constant 0 : i32
    %c0_i32_0 = arith.constant 0 : i32
    %c0_i32_1 = arith.constant 0 : i32
    return %c0_i32, %c0_i32_0 : i32, i32
  }
  func.func @transform_3(%arg0: i32, %arg1: i32) -> (i32, i32) {
    %c0_i32 = arith.constant 0 : i32
    %c0_i32_0 = arith.constant 0 : i32
    %c0_i32_1 = arith.constant 0 : i32
    return %c0_i32, %c0_i32_0 : i32, i32
  }
  func.func @transform_4(%arg0: i32, %arg1: i32) -> (i32, i32) {
    %c0_i32 = arith.constant 0 : i32
    %c0_i32_0 = arith.constant 0 : i32
    %c0_i32_1 = arith.constant 0 : i32
    return %c0_i32, %c0_i32_0 : i32, i32
  }
  func.func @transform_5(%arg0: i32, %arg1: i32) -> (i32, i32, i32) {
    %c0_i32 = arith.constant 0 : i32
    %c0_i32_0 = arith.constant 0 : i32
    %c0_i32_1 = arith.constant 0 : i32
    return %arg1, %c0_i32, %c0_i32_0 : i32, i32, i32
  }
  func.func @transform_6(%arg0: i32, %arg1: i32) -> (i32, i32) {
    %c0_i32 = arith.constant 0 : i32
    %c0_i32_0 = arith.constant 0 : i32
    %c0_i32_1 = arith.constant 0 : i32
    return %c0_i32, %c0_i32_0 : i32, i32
  }
  func.func @transform_7(%arg0: i32, %arg1: i32) -> (i32, i32) {
    %c0_i32 = arith.constant 0 : i32
    %c0_i32_0 = arith.constant 0 : i32
    %c0_i32_1 = arith.constant 0 : i32
    return %c0_i32, %c0_i32_0 : i32, i32
  }
  func.func @transform_8(%arg0: i32, %arg1: i32) -> (i32, i32) {
    %c0_i32 = arith.constant 0 : i32
    %c0_i32_0 = arith.constant 0 : i32
    %c0_i32_1 = arith.constant 0 : i32
    return %c0_i32, %c0_i32_0 : i32, i32
  }
  func.func @transform_9(%arg0: i32, %arg1: i32) -> (i32, i32) {
    %c0_i32 = arith.constant 0 : i32
    %c0_i32_0 = arith.constant 0 : i32
    return %arg0, %c0_i32 : i32, i32
  }
}

</mosaic_0001>

<llo_original>
// kernel: tpu_custom_call.1
$region0: #{tpu_custom_call.1}
  #allocation0 [shape = 'u32[]', space=smem, size = 0x4, offset = 0x4, fixed_abs, tag = 'smem constant byte address 0x4 - core index']
  #allocation1 [shape = 'u32[144,128]{1,0:T(1,128)}', space=vmem, size = 0x12000, scoped, tag = 'internal scratch']
  #allocation2 [shape = 'f32[16,128]{1,0:T(8,128)}', space=vmem, size = 0x2000, scoped, tag = 'scratch operand']
  #allocation3 [shape = 'f32[16,128]{1,0:T(8,128)}', space=vmem, size = 0x2000, scoped, tag = 'scratch operand']
  %s0 = inlined_call_operand.hbm [shape: f32[8,16,16], index: 0, kind: input, shape index: {}]
  %s1 = inlined_call_operand.hbm [shape: f32[16,128], index: 1, kind: input, shape index: {}]
  %s2 = inlined_call_operand.hbm [shape: bf16[16,128], index: 2, kind: input, shape index: {}]
  %s3 = inlined_call_operand.vmem [shape: f32[1,128], index: 3, kind: input, shape index: {}]
  %s4 = inlined_call_operand.hbm [shape: bf16[128,128], index: 4, kind: input, shape index: {}]
  %s5 = inlined_call_operand.hbm [shape: bf16[1,1024,128], index: 5, kind: input, shape index: {}]
  %s6 = inlined_call_operand.vmem [shape: f32[1,128], index: 6, kind: input, shape index: {}]
  %s7 = inlined_call_operand.hbm [shape: bf16[128,128], index: 7, kind: input, shape index: {}]
  %s8 = inlined_call_operand.vmem [shape: f32[1,128], index: 8, kind: input, shape index: {}]
  %s9 = inlined_call_operand.hbm [shape: f32[16,128], index: 9, kind: output, shape index: {}]
  %s10 = sld [smem:[#allocation0]]
  $region78: #{tpu_custom_call.1} parent=0
    _
  %s12 = ssub.s32 1, %s10
  %s13 = scalar_select 0, %s12, %s10
  $region1: #{tpu_custom_call.1} parent=0
    #allocation4 [shape = 'u8[65536]{0}', space=vmem, size = 0x10000, scoped, tag = 'input window, operand 0, single buffered']
    #allocation5 [shape = 's32[1]{0}', space=sflag, size = 0x4, scoped, tag = 'scoped memory for tpu_custom_call.1']
    #allocation6 [shape = 's32[1]{0}', space=sflag, size = 0x4, scoped, tag = 'scoped memory for tpu_custom_call.1']
    #allocation7 [shape = 'u8[8192]{0}', space=vmem, size = 0x2000, scoped, tag = 'input window, operand 1, single buffered']
    #allocation8 [shape = 's32[1]{0}', space=sflag, size = 0x4, scoped, tag = 'scoped memory for tpu_custom_call.1']
    #allocation9 [shape = 'u8[4096]{0}', space=vmem, size = 0x1000, scoped, tag = 'input window, operand 2, single buffered']
    #allocation10 [shape = 'u8[32768]{0}', space=vmem, size = 0x8000, scoped, tag = 'input window, operand 4, single buffered']
    #allocation11 [shape = 's32[1]{0}', space=sflag, size = 0x4, scoped, tag = 'scoped memory for tpu_custom_call.1']
    #allocation12 [shape = 'u8[262144]{0}', space=vmem, size = 0x40000, scoped, tag = 'input window, operand 5, single buffered']
    #allocation13 [shape = 'u8[32768]{0}', space=vmem, size = 0x8000, scoped, tag = 'input window, operand 7, single buffered']
    #allocation14 [shape = 's32[1]{0}', space=sflag, size = 0x4, scoped, tag = 'scoped memory for tpu_custom_call.1']
    #allocation15 [shape = 'u8[8192]{0}', space=vmem, size = 0x2000, scoped, tag = 'output window, operand 0, single buffered']
    %14 = vsyncpa [#allocation5], 0
    %15 = vsyncpa [#allocation8], 0
    %16 = vsyncpa [#allocation11], 0
    %17 = vsyncpa [#allocation14], 0
    %18 = vsyncpa [#allocation6], 0
    // Predicated region
    $region2: #{tpu_custom_call.1} parent=1 // pred_check
      _
    $region3: #{tpu_custom_call.1} parent=1 // pred_check_branch
      %20 = sbr.rel (0) target = $region5
    $region4: #{tpu_custom_call.1} parent=1 // pred_region
      %s22 = ssub.s32 2048, 2048
      %23 = vsyncadd [#allocation5], %s22
      %s24 = sshll.u32 [#allocation4], 4
      %s25 = int_to_ptr.vmem [resolvable:$true] %s24
      %30 = dma.hbm_to_vmem [thread:$0]  %s0, 2048, %s25, [#allocation5], 128, 128, 8
    $region5: #{tpu_custom_call.1} parent=1 // pred_fallthru
      _
    // Predicated region
    $region6: #{tpu_custom_call.1} parent=1 // pred_check
      _
    $region7: #{tpu_custom_call.1} parent=1 // pred_check_branch
      %32 = sbr.rel (0) target = $region9
    $region8: #{tpu_custom_call.1} parent=1 // pred_region
      %s34 = ssub.s32 256, 256
      %35 = vsyncadd [#allocation8], %s34
      %s36 = sshll.u32 [#allocation7], 4
      %s37 = int_to_ptr.vmem [resolvable:$true] %s36
      %42 = dma.hbm_to_vmem [thread:$0]  %s1, 256, %s37, [#allocation8], 128, 128, 8
    $region9: #{tpu_custom_call.1} parent=1 // pred_fallthru
      _
    // Predicated region
    $region10: #{tpu_custom_call.1} parent=1 // pred_check
      _
    $region11: #{tpu_custom_call.1} parent=1 // pred_check_branch
      %44 = sbr.rel (0) target = $region13
    $region12: #{tpu_custom_call.1} parent=1 // pred_region
      %s46 = ssub.s32 128, 128
      %47 = vsyncadd [#allocation8], %s46
      %s48 = sshll.u32 [#allocation9], 4
      %s49 = int_to_ptr.vmem [resolvable:$true] %s48
      %54 = dma.hbm_to_vmem [thread:$0]  %s2, 128, %s49, [#allocation8], 64, 64, 4
    $region13: #{tpu_custom_call.1} parent=1 // pred_fallthru
      _
    // Predicated region
    $region14: #{tpu_custom_call.1} parent=1 // pred_check
      _
    $region15: #{tpu_custom_call.1} parent=1 // pred_check_branch
      %56 = sbr.rel (0) target = $region17
    $region16: #{tpu_custom_call.1} parent=1 // pred_region
      _
    $region17: #{tpu_custom_call.1} parent=1 // pred_fallthru
      _
    // Predicated region
    $region18: #{tpu_custom_call.1} parent=1 // pred_check
      _
    $region19: #{tpu_custom_call.1} parent=1 // pred_check_branch
      %58 = sbr.rel (0) target = $region21
    $region20: #{tpu_custom_call.1} parent=1 // pred_region
      %s60 = ssub.s32 1024, 1024
      %61 = vsyncadd [#allocation11], %s60
      %s62 = sshll.u32 [#allocation10], 4
      %s63 = int_to_ptr.vmem [resolvable:$true] %s62
      %68 = dma.hbm_to_vmem [thread:$0]  %s4, 1024, %s63, [#allocation11], 64, 64, 4
    $region21: #{tpu_custom_call.1} parent=1 // pred_fallthru
      _
    // Predicated region
    $region22: #{tpu_custom_call.1} parent=1 // pred_check
      _
    $region23: #{tpu_custom_call.1} parent=1 // pred_check_branch
      %70 = sbr.rel (0) target = $region25
    $region24: #{tpu_custom_call.1} parent=1 // pred_region
      %s72 = ssub.s32 8192, 8192
      %73 = vsyncadd [#allocation11], %s72
      %s74 = sshll.u32 [#allocation12], 4
      %s75 = int_to_ptr.vmem [resolvable:$true] %s74
      %80 = dma.hbm_to_vmem [thread:$0]  %s5, 8192, %s75, [#allocation11], 64, 64, 4
    $region25: #{tpu_custom_call.1} parent=1 // pred_fallthru
      _
    // Predicated region
    $region26: #{tpu_custom_call.1} parent=1 // pred_check
      _
    $region27: #{tpu_custom_call.1} parent=1 // pred_check_branch
      %82 = sbr.rel (0) target = $region29
    $region28: #{tpu_custom_call.1} parent=1 // pred_region
      _
    $region29: #{tpu_custom_call.1} parent=1 // pred_fallthru
      _
    // Predicated region
    $region30: #{tpu_custom_call.1} parent=1 // pred_check
      _
    $region31: #{tpu_custom_call.1} parent=1 // pred_check_branch
      %84 = sbr.rel (0) target = $region33
    $region32: #{tpu_custom_call.1} parent=1 // pred_region
      %s86 = ssub.s32 1024, 1024
      %87 = vsyncadd [#allocation14], %s86
      %s88 = sshll.u32 [#allocation13], 4
      %s89 = int_to_ptr.vmem [resolvable:$true] %s88
      %94 = dma.hbm_to_vmem [thread:$0]  %s7, 1024, %s89, [#allocation14], 64, 64, 4
    $region33: #{tpu_custom_call.1} parent=1 // pred_fallthru
      _
    // Predicated region
    $region34: #{tpu_custom_call.1} parent=1 // pred_check
      _
    $region35: #{tpu_custom_call.1} parent=1 // pred_check_branch
      %96 = sbr.rel (0) target = $region37
    $region36: #{tpu_custom_call.1} parent=1 // pred_region
      _
    $region37: #{tpu_custom_call.1} parent=1 // pred_fallthru
      _
    // Predicated region
    $region38: #{tpu_custom_call.1} parent=1 // pred_check
      _
    $region39: #{tpu_custom_call.1} parent=1 // pred_check_branch
      %98 = sbr.rel (0) target = $region41
    $region40: #{tpu_custom_call.1} parent=1 // pred_region
      %99 = dma.done [#allocation5], 2048
    $region41: #{tpu_custom_call.1} parent=1 // pred_fallthru
      _
    // Predicated region
    $region42: #{tpu_custom_call.1} parent=1 // pred_check
      _
    $region43: #{tpu_custom_call.1} parent=1 // pred_check_branch
      %101 = sbr.rel (0) target = $region45
    $region44: #{tpu_custom_call.1} parent=1 // pred_region
      %102 = dma.done [#allocation8], 256
    $region45: #{tpu_custom_call.1} parent=1 // pred_fallthru
      _
    // Predicated region
    $region46: #{tpu_custom_call.1} parent=1 // pred_check
      _
    $region47: #{tpu_custom_call.1} parent=1 // pred_check_branch
      %104 = sbr.rel (0) target = $region49
    $region48: #{tpu_custom_call.1} parent=1 // pred_region
      %105 = dma.done [#allocation8], 128
    $region49: #{tpu_custom_call.1} parent=1 // pred_fallthru
      _
    // Predicated region
    $region50: #{tpu_custom_call.1} parent=1 // pred_check
      _
    $region51: #{tpu_custom_call.1} parent=1 // pred_check_branch
      %107 = sbr.rel (0) target = $region53
    $region52: #{tpu_custom_call.1} parent=1 // pred_region
      %108 = dma.done [#allocation11], 1024
    $region53: #{tpu_custom_call.1} parent=1 // pred_fallthru
      _
    // Predicated region
    $region54: #{tpu_custom_call.1} parent=1 // pred_check
      _
    $region55: #{tpu_custom_call.1} parent=1 // pred_check_branch
      %110 = sbr.rel (0) target = $region57
    $region56: #{tpu_custom_call.1} parent=1 // pred_region
      %111 = dma.done [#allocation11], 8192
    $region57: #{tpu_custom_call.1} parent=1 // pred_fallthru
      _
    // Predicated region
    $region58: #{tpu_custom_call.1} parent=1 // pred_check
      _
    $region59: #{tpu_custom_call.1} parent=1 // pred_check_branch
      %113 = sbr.rel (0) target = $region61
    $region60: #{tpu_custom_call.1} parent=1 // pred_region
      %114 = dma.done [#allocation14], 1024
    $region61: #{tpu_custom_call.1} parent=1 // pred_fallthru
      _
    %p116 = scmp.eq.s32.totalorder 0, 0
    // Predicated region
    $region62: #{tpu_custom_call.1} parent=1 // pred_check
      %p117 = pneg %p116
    $region63: #{tpu_custom_call.1} parent=1 // pred_check_branch
      %119 = sbr.rel (%p117) target = $region65
    $region64: #{tpu_custom_call.1} parent=1 // pred_region
      %v120 = vld [vmem:[#allocation7] sm:$0xff]
      %v121 = vld [vmem:[#allocation7 + $0x8] sm:$0xff]
      %122 = vst [vmem:[#allocation2] sm:$0xff] %v120
      %123 = vst [vmem:[#allocation2 + $0x8] sm:$0xff] %v121
      %124 = vst [vmem:[#allocation3] sm:$0xff] 0.0
      %125 = vst [vmem:[#allocation3 + $0x8] sm:$0xff] 0.0
    $region65: #{tpu_custom_call.1} parent=1 // pred_fallthru
      _
    %v126 = vld [vmem:[#allocation9] sm:$0xf]
    %v127 = vld [vmem:[#allocation9 + $0x4] sm:$0xf]
    %v128 = vld [vmem:[%s3] sm:$0x1]
    %v129 = vld [vmem:[#allocation10] sm:$0xf]
    %v130 = vld [vmem:[#allocation10 + $0x4] sm:$0xf]
    %v131 = vld [vmem:[#allocation10 + $0x8] sm:$0xf]
    %v132 = vld [vmem:[#allocation10 + $0xc] sm:$0xf]
    %v133 = vld [vmem:[#allocation10 + $0x10] sm:$0xf]
    %v134 = vld [vmem:[#allocation10 + $0x14] sm:$0xf]
    %v135 = vld [vmem:[#allocation10 + $0x18] sm:$0xf]
    %v136 = vld [vmem:[#allocation10 + $0x1c] sm:$0xf]
    %v137 = vld [vmem:[#allocation10 + $0x20] sm:$0xf]
    %v138 = vld [vmem:[#allocation10 + $0x24] sm:$0xf]
    %v139 = vld [vmem:[#allocation10 + $0x28] sm:$0xf]
    %v140 = vld [vmem:[#allocation10 + $0x2c] sm:$0xf]
    %v141 = vld [vmem:[#allocation10 + $0x30] sm:$0xf]
    %v142 = vld [vmem:[#allocation10 + $0x34] sm:$0xf]
    %v143 = vld [vmem:[#allocation10 + $0x38] sm:$0xf]
    %v144 = vld [vmem:[#allocation10 + $0x3c] sm:$0xf]
    %v145 = vld [vmem:[#allocation2] sm:$0xff]
    %v146 = vld [vmem:[#allocation2 + $0x8] sm:$0xff]
    %v147 = vpack.c.bf16 %v146, %v145
    %v148 = vld [vmem:[#allocation4] sm:$0xff]
    %v149 = vld [vmem:[#allocation4 + $0x8] sm:$0xff]
    %v150 = vpack.c.bf16 %v149, %v148
    %v152 = vlaneseq
    %v153 = vshrl.u32 %v152, 7
    %v154 = vsub.s32 0, %v153
    %v155 = vrot.slane %v128, %v154
    %v159 = vunpack.c.l.b16 %v126
    %v160 = vunpack.c.l.b16 %v127
    %v161 = vpack.c.b16 %v160, %v159
    %vm163 = vcmask 130048
    %v165 = vsel %vm163, %v150, 0
    %167 = vmatprep.subr.bf16.mxu0 0
    %168 = vmatpush1.bf16.msra.mxu0 %v161
    %169 = vmatprep.subr.bf16.mxu0 0
    %170 = vmatpush1.bf16.msra.mxu0 0
    %171 = vmatprep.subr.bf16.mxu0 0
    %172 = vmatpush1.bf16.msra.mxu0 0
    %173 = vmatprep.subr.bf16.mxu0 0
    %174 = vmatpush1.bf16.msra.mxu0 0
    %175 = vmatprep.subr.bf16.mxu0 0
    %176 = vmatpush1.bf16.msra.mxu0 0
    %177 = vmatprep.subr.bf16.mxu0 0
    %178 = vmatpush1.bf16.msra.mxu0 0
    %179 = vmatprep.subr.bf16.mxu0 0
    %180 = vmatpush1.bf16.msra.mxu0 0
    %181 = vmatprep.subr.bf16.mxu0 0
    %182 = vmatpush1.bf16.msra.mxu0 0
    %183 = vmatprep.subr.bf16.mxu0 0
    %184 = vmatpush1.bf16.msra.mxu0 0
    %185 = vmatprep.subr.bf16.mxu0 0
    %186 = vmatpush1.bf16.msra.mxu0 0
    %187 = vmatprep.subr.bf16.mxu0 0
    %188 = vmatpush1.bf16.msra.mxu0 0
    %189 = vmatprep.subr.bf16.mxu0 0
    %190 = vmatpush1.bf16.msra.mxu0 0
    %191 = vmatprep.subr.bf16.mxu0 0
    %192 = vmatpush1.bf16.msra.mxu0 0
    %193 = vmatprep.subr.bf16.mxu0 0
    %194 = vmatpush1.bf16.msra.mxu0 0
    %195 = vmatprep.subr.bf16.mxu0 0
    %196 = vmatpush1.bf16.msra.mxu0 0
    %197 = vmatprep.subr.bf16.mxu0 0
    %198 = vmatpush1.bf16.msra.mxu0 0
    %199 = vmatprep.mubr.bf16.mxu0 0
    %200 = vmatmul.mubr.bf16.gmra.mrb[0].mxu0 %v165
    %v201 = vpop.f32.mrb[0].mxu0
    %v202 = vadd.f32 %v155, %v201
    %v203 = vpop.f32.mrb[0].mxu0
    %v204 = vpop.f32.mrb[0].mxu0
    %v205 = vadd.f32 %v155, %v204
    %v206 = vpop.f32.mrb[0].mxu0
    %207 = vdwg.mxu0
    %v224 = vunpack.c.l.b16 %v129
    %v225 = vunpack.c.l.b16 %v130
    %v226 = vunpack.c.l.b16 %v131
    %v227 = vunpack.c.l.b16 %v132
    %v228 = vunpack.c.l.b16 %v133
    %v229 = vunpack.c.l.b16 %v134
    %v230 = vunpack.c.l.b16 %v135
    %v231 = vunpack.c.l.b16 %v136
    %v232 = vunpack.c.l.b16 %v137
    %v233 = vunpack.c.l.b16 %v138
    %v234 = vunpack.c.l.b16 %v139
    %v235 = vunpack.c.l.b16 %v140
    %v236 = vunpack.c.l.b16 %v141
    %v237 = vunpack.c.l.b16 %v142
    %v238 = vunpack.c.l.b16 %v143
    %v239 = vunpack.c.l.b16 %v144
    %v240 = vpack.c.b16 %v225, %v224
    %v241 = vpack.c.b16 %v227, %v226
    %v242 = vpack.c.b16 %v229, %v228
    %v243 = vpack.c.b16 %v231, %v230
    %v244 = vpack.c.b16 %v233, %v232
    %v245 = vpack.c.b16 %v235, %v234
    %v246 = vpack.c.b16 %v237, %v236
    %v247 = vpack.c.b16 %v239, %v238
    %256 = vmatprep.subr.bf16.mxu0 0
    %257 = vmatpush1.bf16.msra.mxu0 %v240
    %258 = vmatprep.subr.bf16.mxu0 0
    %259 = vmatpush1.bf16.msra.mxu0 %v241
    %260 = vmatprep.subr.bf16.mxu0 0
    %261 = vmatpush1.bf16.msra.mxu0 %v242
    %262 = vmatprep.subr.bf16.mxu0 0
    %263 = vmatpush1.bf16.msra.mxu0 %v243
    %264 = vmatprep.subr.bf16.mxu0 0
    %265 = vmatpush1.bf16.msra.mxu0 %v244
    %266 = vmatprep.subr.bf16.mxu0 0
    %267 = vmatpush1.bf16.msra.mxu0 %v245
    %268 = vmatprep.subr.bf16.mxu0 0
    %269 = vmatpush1.bf16.msra.mxu0 %v246
    %270 = vmatprep.subr.bf16.mxu0 0
    %271 = vmatpush1.bf16.msra.mxu0 %v247
    %272 = vmatprep.subr.bf16.mxu0 0
    %273 = vmatpush1.bf16.msra.mxu0 0
    %274 = vmatprep.subr.bf16.mxu0 0
    %275 = vmatpush1.bf16.msra.mxu0 0
    %276 = vmatprep.subr.bf16.mxu0 0
    %277 = vmatpush1.bf16.msra.mxu0 0
    %278 = vmatprep.subr.bf16.mxu0 0
    %279 = vmatpush1.bf16.msra.mxu0 0
    %280 = vmatprep.subr.bf16.mxu0 0
    %281 = vmatpush1.bf16.msra.mxu0 0
    %282 = vmatprep.subr.bf16.mxu0 0
    %283 = vmatpush1.bf16.msra.mxu0 0
    %284 = vmatprep.subr.bf16.mxu0 0
    %285 = vmatpush1.bf16.msra.mxu0 0
    %286 = vmatprep.subr.bf16.mxu0 0
    %287 = vmatpush1.bf16.msra.mxu0 0
    %288 = vmatprep.mubr.bf16.mxu0 0
    %289 = vmatmul.mubr.bf16.gmra.mrb[0].mxu0 %v147
    %v290 = vpop.f32.mrb[0].mxu0
    %v291 = vadd.f32 0.0, %v290
    %v292 = vpop.f32.mrb[0].mxu0
    %v293 = vpop.f32.mrb[0].mxu0
    %v294 = vadd.f32 0.0, %v293
    %v295 = vpop.f32.mrb[0].mxu0
    %296 = vdwg.mxu0
    %v297 = vadd.f32 %v202, %v291
    %v298 = vadd.f32 %v205, %v294
    %v299 = vtanh.pop %v297
    %v300 = vtanh.pop %v298
    %v301 = vpack.c.bf16 %v300, %v299
    %s302 = scalar_lea.vmem [#allocation4], 16
    %v303 = vld [vmem:[%s302] sm:$0xff]
    %v304 = vld [vmem:[%s302 + $0x8] sm:$0xff]
    %v305 = vpack.c.bf16 %v304, %v303
    %v307 = vsel %vm163, %v305, 0
    %309 = vmatprep.subr.bf16.mxu0 0
    %310 = vmatpush1.bf16.msra.mxu0 %v161
    %311 = vmatprep.subr.bf16.mxu0 0
    %312 = vmatpush1.bf16.msra.mxu0 0
    %313 = vmatprep.subr.bf16.mxu0 0
    %314 = vmatpush1.bf16.msra.mxu0 0
    %315 = vmatprep.subr.bf16.mxu0 0
    %316 = vmatpush1.bf16.msra.mxu0 0
    %317 = vmatprep.subr.bf16.mxu0 0
    %318 = vmatpush1.bf16.msra.mxu0 0
    %319 = vmatprep.subr.bf16.mxu0 0
    %320 = vmatpush1.bf16.msra.mxu0 0
    %321 = vmatprep.subr.bf16.mxu0 0
    %322 = vmatpush1.bf16.msra.mxu0 0
    %323 = vmatprep.subr.bf16.mxu0 0
    %324 = vmatpush1.bf16.msra.mxu0 0
    %325 = vmatprep.subr.bf16.mxu0 0
    %326 = vmatpush1.bf16.msra.mxu0 0
    %327 = vmatprep.subr.bf16.mxu0 0
    %328 = vmatpush1.bf16.msra.mxu0 0
    %329 = vmatprep.subr.bf16.mxu0 0
    %330 = vmatpush1.bf16.msra.mxu0 0
    %331 = vmatprep.subr.bf16.mxu0 0
    %332 = vmatpush1.bf16.msra.mxu0 0
    %333 = vmatprep.subr.bf16.mxu0 0
    %334 = vmatpush1.bf16.msra.mxu0 0
    %335 = vmatprep.subr.bf16.mxu0 0
    %336 = vmatpush1.bf16.msra.mxu0 0
    %337 = vmatprep.subr.bf16.mxu0 0
    %338 = vmatpush1.bf16.msra.mxu0 0
    %339 = vmatprep.subr.bf16.mxu0 0
    %340 = vmatpush1.bf16.msra.mxu0 0
    %341 = vmatprep.mubr.bf16.mxu0 0
    %342 = vmatmul.mubr.bf16.gmra.mrb[0].mxu0 %v307
    %v343 = vpop.f32.mrb[0].mxu0
    %v344 = vadd.f32 %v155, %v343
    %v345 = vpop.f32.mrb[0].mxu0
    %v346 = vpop.f32.mrb[0].mxu0
    %v347 = vadd.f32 %v155, %v346
    %v348 = vpop.f32.mrb[0].mxu0
    %349 = vdwg.mxu0
    %350 = vmatprep.subr.bf16.mxu0 0
    %351 = vmatpush1.bf16.msra.mxu0 %v240
    %352 = vmatprep.subr.bf16.mxu0 0
    %353 = vmatpush1.bf16.msra.mxu0 %v241
    %354 = vmatprep.subr.bf16.mxu0 0
    %355 = vmatpush1.bf16.msra.mxu0 %v242
    %356 = vmatprep.subr.bf16.mxu0 0
    %357 = vmatpush1.bf16.msra.mxu0 %v243
    %358 = vmatprep.subr.bf16.mxu0 0
    %359 = vmatpush1.bf16.msra.mxu0 %v244
    %360 = vmatprep.subr.bf16.mxu0 0
    %361 = vmatpush1.bf16.msra.mxu0 %v245
    %362 = vmatprep.subr.bf16.mxu0 0
    %363 = vmatpush1.bf16.msra.mxu0 %v246
    %364 = vmatprep.subr.bf16.mxu0 0
    %365 = vmatpush1.bf16.msra.mxu0 %v247
    %366 = vmatprep.subr.bf16.mxu0 0
    %367 = vmatpush1.bf16.msra.mxu0 0
    %368 = vmatprep.subr.bf16.mxu0 0
    %369 = vmatpush1.bf16.msra.mxu0 0
    %370 = vmatprep.subr.bf16.mxu0 0
    %371 = vmatpush1.bf16.msra.mxu0 0
    %372 = vmatprep.subr.bf16.mxu0 0
    %373 = vmatpush1.bf16.msra.mxu0 0
    %374 = vmatprep.subr.bf16.mxu0 0
    %375 = vmatpush1.bf16.msra.mxu0 0
    %376 = vmatprep.subr.bf16.mxu0 0
    %377 = vmatpush1.bf16.msra.mxu0 0
    %378 = vmatprep.subr.bf16.mxu0 0
    %379 = vmatpush1.bf16.msra.mxu0 0
    %380 = vmatprep.subr.bf16.mxu0 0
    %381 = vmatpush1.bf16.msra.mxu0 0
    %382 = vmatprep.mubr.bf16.mxu0 0
    %383 = vmatmul.mubr.bf16.gmra.mrb[0].mxu0 %v301
    %v384 = vpop.f32.mrb[0].mxu0
    %v385 = vadd.f32 0.0, %v384
    %v386 = vpop.f32.mrb[0].mxu0
    %v387 = vpop.f32.mrb[0].mxu0
    %v388 = vadd.f32 0.0, %v387
    %v389 = vpop.f32.mrb[0].mxu0
    %390 = vdwg.mxu0
    %v391 = vadd.f32 %v344, %v385
    %v392 = vadd.f32 %v347, %v388
    %v393 = vtanh.pop %v391
    %v394 = vtanh.pop %v392
    %v395 = vpack.c.bf16 %v394, %v393
    %s396 = scalar_lea.vmem [#allocation4], 32
    %v397 = vld [vmem:[%s396] sm:$0xff]
    %v398 = vld [vmem:[%s396 + $0x8] sm:$0xff]
    %v399 = vpack.c.bf16 %v398, %v397
    %v401 = vsel %vm163, %v399, 0
    %403 = vmatprep.subr.bf16.mxu0 0
    %404 = vmatpush1.bf16.msra.mxu0 %v161
    %405 = vmatprep.subr.bf16.mxu0 0
    %406 = vmatpush1.bf16.msra.mxu0 0
    %407 = vmatprep.subr.bf16.mxu0 0
    %408 = vmatpush1.bf16.msra.mxu0 0
    %409 = vmatprep.subr.bf16.mxu0 0
    %410 = vmatpush1.bf16.msra.mxu0 0
    %411 = vmatprep.subr.bf16.mxu0 0
    %412 = vmatpush1.bf16.msra.mxu0 0
    %413 = vmatprep.subr.bf16.mxu0 0
    %414 = vmatpush1.bf16.msra.mxu0 0
    %415 = vmatprep.subr.bf16.mxu0 0
    %416 = vmatpush1.bf16.msra.mxu0 0
    %417 = vmatprep.subr.bf16.mxu0 0
    %418 = vmatpush1.bf16.msra.mxu0 0
    %419 = vmatprep.subr.bf16.mxu0 0
    %420 = vmatpush1.bf16.msra.mxu0 0
    %421 = vmatprep.subr.bf16.mxu0 0
    %422 = vmatpush1.bf16.msra.mxu0 0
    %423 = vmatprep.subr.bf16.mxu0 0
    %424 = vmatpush1.bf16.msra.mxu0 0
    %425 = vmatprep.subr.bf16.mxu0 0
    %426 = vmatpush1.bf16.msra.mxu0 0
    %427 = vmatprep.subr.bf16.mxu0 0
    %428 = vmatpush1.bf16.msra.mxu0 0
    %429 = vmatprep.subr.bf16.mxu0 0
    %430 = vmatpush1.bf16.msra.mxu0 0
    %431 = vmatprep.subr.bf16.mxu0 0
    %432 = vmatpush1.bf16.msra.mxu0 0
    %433 = vmatprep.subr.bf16.mxu0 0
    %434 = vmatpush1.bf16.msra.mxu0 0
    %435 = vmatprep.mubr.bf16.mxu0 0
    %436 = vmatmul.mubr.bf16.gmra.mrb[0].mxu0 %v401
    %v437 = vpop.f32.mrb[0].mxu0
    %v438 = vadd.f32 %v155, %v437
    %v439 = vpop.f32.mrb[0].mxu0
    %v440 = vpop.f32.mrb[0].mxu0
    %v441 = vadd.f32 %v155, %v440
    %v442 = vpop.f32.mrb[0].mxu0
    %443 = vdwg.mxu0
    %444 = vmatprep.subr.bf16.mxu0 0
    %445 = vmatpush1.bf16.msra.mxu0 %v240
    %446 = vmatprep.subr.bf16.mxu0 0
    %447 = vmatpush1.bf16.msra.mxu0 %v241
    %448 = vmatprep.subr.bf16.mxu0 0
    %449 = vmatpush1.bf16.msra.mxu0 %v242
    %450 = vmatprep.subr.bf16.mxu0 0
    %451 = vmatpush1.bf16.msra.mxu0 %v243
    %452 = vmatprep.subr.bf16.mxu0 0
    %453 = vmatpush1.bf16.msra.mxu0 %v244
    %454 = vmatprep.subr.bf16.mxu0 0
    %455 = vmatpush1.bf16.msra.mxu0 %v245
    %456 = vmatprep.subr.bf16.mxu0 0
    %457 = vmatpush1.bf16.msra.mxu0 %v246
    %458 = vmatprep.subr.bf16.mxu0 0
    %459 = vmatpush1.bf16.msra.mxu0 %v247
    %460 = vmatprep.subr.bf16.mxu0 0
    %461 = vmatpush1.bf16.msra.mxu0 0
    %462 = vmatprep.subr.bf16.mxu0 0
    %463 = vmatpush1.bf16.msra.mxu0 0
    %464 = vmatprep.subr.bf16.mxu0 0
    %465 = vmatpush1.bf16.msra.mxu0 0
    %466 = vmatprep.subr.bf16.mxu0 0
    %467 = vmatpush1.bf16.msra.mxu0 0
    %468 = vmatprep.subr.bf16.mxu0 0
    %469 = vmatpush1.bf16.msra.mxu0 0
    %470 = vmatprep.subr.bf16.mxu0 0
    %471 = vmatpush1.bf16.msra.mxu0 0
    %472 = vmatprep.subr.bf16.mxu0 0
    %473 = vmatpush1.bf16.msra.mxu0 0
    %474 = vmatprep.subr.bf16.mxu0 0
    %475 = vmatpush1.bf16.msra.mxu0 0
    %476 = vmatprep.mubr.bf16.mxu0 0
    %477 = vmatmul.mubr.bf16.gmra.mrb[0].mxu0 %v395
    %v478 = vpop.f32.mrb[0].mxu0
    %v479 = vadd.f32 0.0, %v478
    %v480 = vpop.f32.mrb[0].mxu0
    %v481 = vpop.f32.mrb[0].mxu0
    %v482 = vadd.f32 0.0, %v481
    %v483 = vpop.f32.mrb[0].mxu0
    %484 = vdwg.mxu0
    %v485 = vadd.f32 %v438, %v479
    %v486 = vadd.f32 %v441, %v482
    %v487 = vtanh.pop %v485
    %v488 = vtanh.pop %v486
    %v489 = vpack.c.bf16 %v488, %v487
    %s490 = scalar_lea.vmem [#allocation4], 48
    %v491 = vld [vmem:[%s490] sm:$0xff]
    %v492 = vld [vmem:[%s490 + $0x8] sm:$0xff]
    %v493 = vpack.c.bf16 %v492, %v491
    %v495 = vsel %vm163, %v493, 0
    %497 = vmatprep.subr.bf16.mxu0 0
    %498 = vmatpush1.bf16.msra.mxu0 %v161
    %499 = vmatprep.subr.bf16.mxu0 0
    %500 = vmatpush1.bf16.msra.mxu0 0
    %501 = vmatprep.subr.bf16.mxu0 0
    %502 = vmatpush1.bf16.msra.mxu0 0
    %503 = vmatprep.subr.bf16.mxu0 0
    %504 = vmatpush1.bf16.msra.mxu0 0
    %505 = vmatprep.subr.bf16.mxu0 0
    %506 = vmatpush1.bf16.msra.mxu0 0
    %507 = vmatprep.subr.bf16.mxu0 0
    %508 = vmatpush1.bf16.msra.mxu0 0
    %509 = vmatprep.subr.bf16.mxu0 0
    %510 = vmatpush1.bf16.msra.mxu0 0
    %511 = vmatprep.subr.bf16.mxu0 0
    %512 = vmatpush1.bf16.msra.mxu0 0
    %513 = vmatprep.subr.bf16.mxu0 0
    %514 = vmatpush1.bf16.msra.mxu0 0
    %515 = vmatprep.subr.bf16.mxu0 0
    %516 = vmatpush1.bf16.msra.mxu0 0
    %517 = vmatprep.subr.bf16.mxu0 0
    %518 = vmatpush1.bf16.msra.mxu0 0
    %519 = vmatprep.subr.bf16.mxu0 0
    %520 = vmatpush1.bf16.msra.mxu0 0
    %521 = vmatprep.subr.bf16.mxu0 0
    %522 = vmatpush1.bf16.msra.mxu0 0
    %523 = vmatprep.subr.bf16.mxu0 0
    %524 = vmatpush1.bf16.msra.mxu0 0
    %525 = vmatprep.subr.bf16.mxu0 0
    %526 = vmatpush1.bf16.msra.mxu0 0
    %527 = vmatprep.subr.bf16.mxu0 0
    %528 = vmatpush1.bf16.msra.mxu0 0
    %529 = vmatprep.mubr.bf16.mxu0 0
    %530 = vmatmul.mubr.bf16.gmra.mrb[0].mxu0 %v495
    %v531 = vpop.f32.mrb[0].mxu0
    %v532 = vadd.f32 %v155, %v531
    %v533 = vpop.f32.mrb[0].mxu0
    %v534 = vpop.f32.mrb[0].mxu0
    %v535 = vadd.f32 %v155, %v534
    %v536 = vpop.f32.mrb[0].mxu0
    %537 = vdwg.mxu0
    %538 = vmatprep.subr.bf16.mxu0 0
    %539 = vmatpush1.bf16.msra.mxu0 %v240
    %540 = vmatprep.subr.bf16.mxu0 0
    %541 = vmatpush1.bf16.msra.mxu0 %v241
    %542 = vmatprep.subr.bf16.mxu0 0
    %543 = vmatpush1.bf16.msra.mxu0 %v242
    %544 = vmatprep.subr.bf16.mxu0 0
    %545 = vmatpush1.bf16.msra.mxu0 %v243
    %546 = vmatprep.subr.bf16.mxu0 0
    %547 = vmatpush1.bf16.msra.mxu0 %v244
    %548 = vmatprep.subr.bf16.mxu0 0
    %549 = vmatpush1.bf16.msra.mxu0 %v245
    %550 = vmatprep.subr.bf16.mxu0 0
    %551 = vmatpush1.bf16.msra.mxu0 %v246
    %552 = vmatprep.subr.bf16.mxu0 0
    %553 = vmatpush1.bf16.msra.mxu0 %v247
    %554 = vmatprep.subr.bf16.mxu0 0
    %555 = vmatpush1.bf16.msra.mxu0 0
    %556 = vmatprep.subr.bf16.mxu0 0
    %557 = vmatpush1.bf16.msra.mxu0 0
    %558 = vmatprep.subr.bf16.mxu0 0
    %559 = vmatpush1.bf16.msra.mxu0 0
    %560 = vmatprep.subr.bf16.mxu0 0
    %561 = vmatpush1.bf16.msra.mxu0 0
    %562 = vmatprep.subr.bf16.mxu0 0
    %563 = vmatpush1.bf16.msra.mxu0 0
    %564 = vmatprep.subr.bf16.mxu0 0
    %565 = vmatpush1.bf16.msra.mxu0 0
    %566 = vmatprep.subr.bf16.mxu0 0
    %567 = vmatpush1.bf16.msra.mxu0 0
    %568 = vmatprep.subr.bf16.mxu0 0
    %569 = vmatpush1.bf16.msra.mxu0 0
    %570 = vmatprep.mubr.bf16.mxu0 0
    %571 = vmatmul.mubr.bf16.gmra.mrb[0].mxu0 %v489
    %v572 = vpop.f32.mrb[0].mxu0
    %v573 = vadd.f32 0.0, %v572
    %v574 = vpop.f32.mrb[0].mxu0
    %v575 = vpop.f32.mrb[0].mxu0
    %v576 = vadd.f32 0.0, %v575
    %v577 = vpop.f32.mrb[0].mxu0
    %578 = vdwg.mxu0
    %v579 = vadd.f32 %v532, %v573
    %v580 = vadd.f32 %v535, %v576
    %v581 = vtanh.pop %v579
    %v582 = vtanh.pop %v580
    %v583 = vpack.c.bf16 %v582, %v581
    %s584 = scalar_lea.vmem [#allocation4], 64
    %v585 = vld [vmem:[%s584] sm:$0xff]
    %v586 = vld [vmem:[%s584 + $0x8] sm:$0xff]
    %v587 = vpack.c.bf16 %v586, %v585
    %v589 = vsel %vm163, %v587, 0
    %591 = vmatprep.subr.bf16.mxu0 0
    %592 = vmatpush1.bf16.msra.mxu0 %v161
    %593 = vmatprep.subr.bf16.mxu0 0
    %594 = vmatpush1.bf16.msra.mxu0 0
    %595 = vmatprep.subr.bf16.mxu0 0
    %596 = vmatpush1.bf16.msra.mxu0 0
    %597 = vmatprep.subr.bf16.mxu0 0
    %598 = vmatpush1.bf16.msra.mxu0 0
    %599 = vmatprep.subr.bf16.mxu0 0
    %600 = vmatpush1.bf16.msra.mxu0 0
    %601 = vmatprep.subr.bf16.mxu0 0
    %602 = vmatpush1.bf16.msra.mxu0 0
    %603 = vmatprep.subr.bf16.mxu0 0
    %604 = vmatpush1.bf16.msra.mxu0 0
    %605 = vmatprep.subr.bf16.mxu0 0
    %606 = vmatpush1.bf16.msra.mxu0 0
    %607 = vmatprep.subr.bf16.mxu0 0
    %608 = vmatpush1.bf16.msra.mxu0 0
    %609 = vmatprep.subr.bf16.mxu0 0
    %610 = vmatpush1.bf16.msra.mxu0 0
    %611 = vmatprep.subr.bf16.mxu0 0
    %612 = vmatpush1.bf16.msra.mxu0 0
    %613 = vmatprep.subr.bf16.mxu0 0
    %614 = vmatpush1.bf16.msra.mxu0 0
    %615 = vmatprep.subr.bf16.mxu0 0
    %616 = vmatpush1.bf16.msra.mxu0 0
    %617 = vmatprep.subr.bf16.mxu0 0
    %618 = vmatpush1.bf16.msra.mxu0 0
    %619 = vmatprep.subr.bf16.mxu0 0
    %620 = vmatpush1.bf16.msra.mxu0 0
    %621 = vmatprep.subr.bf16.mxu0 0
    %622 = vmatpush1.bf16.msra.mxu0 0
    %623 = vmatprep.mubr.bf16.mxu0 0
    %624 = vmatmul.mubr.bf16.gmra.mrb[0].mxu0 %v589
    %v625 = vpop.f32.mrb[0].mxu0
    %v626 = vadd.f32 %v155, %v625
    %v627 = vpop.f32.mrb[0].mxu0
    %v628 = vpop.f32.mrb[0].mxu0
    %v629 = vadd.f32 %v155, %v628
    %v630 = vpop.f32.mrb[0].mxu0
    %631 = vdwg.mxu0
    %632 = vmatprep.subr.bf16.mxu0 0
    %633 = vmatpush1.bf16.msra.mxu0 %v240
    %634 = vmatprep.subr.bf16.mxu0 0
    %635 = vmatpush1.bf16.msra.mxu0 %v241
    %636 = vmatprep.subr.bf16.mxu0 0
    %637 = vmatpush1.bf16.msra.mxu0 %v242
    %638 = vmatprep.subr.bf16.mxu0 0
    %639 = vmatpush1.bf16.msra.mxu0 %v243
    %640 = vmatprep.subr.bf16.mxu0 0
    %641 = vmatpush1.bf16.msra.mxu0 %v244
    %642 = vmatprep.subr.bf16.mxu0 0
    %643 = vmatpush1.bf16.msra.mxu0 %v245
    %644 = vmatprep.subr.bf16.mxu0 0
    %645 = vmatpush1.bf16.msra.mxu0 %v246
    %646 = vmatprep.subr.bf16.mxu0 0
    %647 = vmatpush1.bf16.msra.mxu0 %v247
    %648 = vmatprep.subr.bf16.mxu0 0
    %649 = vmatpush1.bf16.msra.mxu0 0
    %650 = vmatprep.subr.bf16.mxu0 0
    %651 = vmatpush1.bf16.msra.mxu0 0
    %652 = vmatprep.subr.bf16.mxu0 0
    %653 = vmatpush1.bf16.msra.mxu0 0
    %654 = vmatprep.subr.bf16.mxu0 0
    %655 = vmatpush1.bf16.msra.mxu0 0
    %656 = vmatprep.subr.bf16.mxu0 0
    %657 = vmatpush1.bf16.msra.mxu0 0
    %658 = vmatprep.subr.bf16.mxu0 0
    %659 = vmatpush1.bf16.msra.mxu0 0
    %660 = vmatprep.subr.bf16.mxu0 0
    %661 = vmatpush1.bf16.msra.mxu0 0
    %662 = vmatprep.subr.bf16.mxu0 0
    %663 = vmatpush1.bf16.msra.mxu0 0
    %664 = vmatprep.mubr.bf16.mxu0 0
    %665 = vmatmul.mubr.bf16.gmra.mrb[0].mxu0 %v583
    %v666 = vpop.f32.mrb[0].mxu0
    %v667 = vadd.f32 0.0, %v666
    %v668 = vpop.f32.mrb[0].mxu0
    %v669 = vpop.f32.mrb[0].mxu0
    %v670 = vadd.f32 0.0, %v669
    %v671 = vpop.f32.mrb[0].mxu0
    %672 = vdwg.mxu0
    %v673 = vadd.f32 %v626, %v667
    %v674 = vadd.f32 %v629, %v670
    %v675 = vtanh.pop %v673
    %v676 = vtanh.pop %v674
    %v677 = vpack.c.bf16 %v676, %v675
    %s678 = scalar_lea.vmem [#allocation4], 80
    %v679 = vld [vmem:[%s678] sm:$0xff]
    %v680 = vld [vmem:[%s678 + $0x8] sm:$0xff]
    %v681 = vpack.c.bf16 %v680, %v679
    %v683 = vsel %vm163, %v681, 0
    %685 = vmatprep.subr.bf16.mxu0 0
    %686 = vmatpush1.bf16.msra.mxu0 %v161
    %687 = vmatprep.subr.bf16.mxu0 0
    %688 = vmatpush1.bf16.msra.mxu0 0
    %689 = vmatprep.subr.bf16.mxu0 0
    %690 = vmatpush1.bf16.msra.mxu0 0
    %691 = vmatprep.subr.bf16.mxu0 0
    %692 = vmatpush1.bf16.msra.mxu0 0
    %693 = vmatprep.subr.bf16.mxu0 0
    %694 = vmatpush1.bf16.msra.mxu0 0
    %695 = vmatprep.subr.bf16.mxu0 0
    %696 = vmatpush1.bf16.msra.mxu0 0
    %697 = vmatprep.subr.bf16.mxu0 0
    %698 = vmatpush1.bf16.msra.mxu0 0
    %699 = vmatprep.subr.bf16.mxu0 0
    %700 = vmatpush1.bf16.msra.mxu0 0
    %701 = vmatprep.subr.bf16.mxu0 0
    %702 = vmatpush1.bf16.msra.mxu0 0
    %703 = vmatprep.subr.bf16.mxu0 0
    %704 = vmatpush1.bf16.msra.mxu0 0
    %705 = vmatprep.subr.bf16.mxu0 0
    %706 = vmatpush1.bf16.msra.mxu0 0
    %707 = vmatprep.subr.bf16.mxu0 0
    %708 = vmatpush1.bf16.msra.mxu0 0
    %709 = vmatprep.subr.bf16.mxu0 0
    %710 = vmatpush1.bf16.msra.mxu0 0
    %711 = vmatprep.subr.bf16.mxu0 0
    %712 = vmatpush1.bf16.msra.mxu0 0
    %713 = vmatprep.subr.bf16.mxu0 0
    %714 = vmatpush1.bf16.msra.mxu0 0
    %715 = vmatprep.subr.bf16.mxu0 0
    %716 = vmatpush1.bf16.msra.mxu0 0
    %717 = vmatprep.mubr.bf16.mxu0 0
    %718 = vmatmul.mubr.bf16.gmra.mrb[0].mxu0 %v683
    %v719 = vpop.f32.mrb[0].mxu0
    %v720 = vadd.f32 %v155, %v719
    %v721 = vpop.f32.mrb[0].mxu0
    %v722 = vpop.f32.mrb[0].mxu0
    %v723 = vadd.f32 %v155, %v722
    %v724 = vpop.f32.mrb[0].mxu0
    %725 = vdwg.mxu0
    %726 = vmatprep.subr.bf16.mxu0 0
    %727 = vmatpush1.bf16.msra.mxu0 %v240
    %728 = vmatprep.subr.bf16.mxu0 0
    %729 = vmatpush1.bf16.msra.mxu0 %v241
    %730 = vmatprep.subr.bf16.mxu0 0
    %731 = vmatpush1.bf16.msra.mxu0 %v242
    %732 = vmatprep.subr.bf16.mxu0 0
    %733 = vmatpush1.bf16.msra.mxu0 %v243
    %734 = vmatprep.subr.bf16.mxu0 0
    %735 = vmatpush1.bf16.msra.mxu0 %v244
    %736 = vmatprep.subr.bf16.mxu0 0
    %737 = vmatpush1.bf16.msra.mxu0 %v245
    %738 = vmatprep.subr.bf16.mxu0 0
    %739 = vmatpush1.bf16.msra.mxu0 %v246
    %740 = vmatprep.subr.bf16.mxu0 0
    %741 = vmatpush1.bf16.msra.mxu0 %v247
    %742 = vmatprep.subr.bf16.mxu0 0
    %743 = vmatpush1.bf16.msra.mxu0 0
    %744 = vmatprep.subr.bf16.mxu0 0
    %745 = vmatpush1.bf16.msra.mxu0 0
    %746 = vmatprep.subr.bf16.mxu0 0
    %747 = vmatpush1.bf16.msra.mxu0 0
    %748 = vmatprep.subr.bf16.mxu0 0
    %749 = vmatpush1.bf16.msra.mxu0 0
    %750 = vmatprep.subr.bf16.mxu0 0
    %751 = vmatpush1.bf16.msra.mxu0 0
    %752 = vmatprep.subr.bf16.mxu0 0
    %753 = vmatpush1.bf16.msra.mxu0 0
    %754 = vmatprep.subr.bf16.mxu0 0
    %755 = vmatpush1.bf16.msra.mxu0 0
    %756 = vmatprep.subr.bf16.mxu0 0
    %757 = vmatpush1.bf16.msra.mxu0 0
    %758 = vmatprep.mubr.bf16.mxu0 0
    %759 = vmatmul.mubr.bf16.gmra.mrb[0].mxu0 %v677
    %v760 = vpop.f32.mrb[0].mxu0
    %v761 = vadd.f32 0.0, %v760
    %v762 = vpop.f32.mrb[0].mxu0
    %v763 = vpop.f32.mrb[0].mxu0
    %v764 = vadd.f32 0.0, %v763
    %v765 = vpop.f32.mrb[0].mxu0
    %766 = vdwg.mxu0
    %v767 = vadd.f32 %v720, %v761
    %v768 = vadd.f32 %v723, %v764
    %v769 = vtanh.pop %v767
    %v770 = vtanh.pop %v768
    %v771 = vpack.c.bf16 %v770, %v769
    %s772 = scalar_lea.vmem [#allocation4], 96
    %v773 = vld [vmem:[%s772] sm:$0xff]
    %v774 = vld [vmem:[%s772 + $0x8] sm:$0xff]
    %v775 = vpack.c.bf16 %v774, %v773
    %v777 = vsel %vm163, %v775, 0
    %779 = vmatprep.subr.bf16.mxu0 0
    %780 = vmatpush1.bf16.msra.mxu0 %v161
    %781 = vmatprep.subr.bf16.mxu0 0
    %782 = vmatpush1.bf16.msra.mxu0 0
    %783 = vmatprep.subr.bf16.mxu0 0
    %784 = vmatpush1.bf16.msra.mxu0 0
    %785 = vmatprep.subr.bf16.mxu0 0
    %786 = vmatpush1.bf16.msra.mxu0 0
    %787 = vmatprep.subr.bf16.mxu0 0
    %788 = vmatpush1.bf16.msra.mxu0 0
    %789 = vmatprep.subr.bf16.mxu0 0
    %790 = vmatpush1.bf16.msra.mxu0 0
    %791 = vmatprep.subr.bf16.mxu0 0
    %792 = vmatpush1.bf16.msra.mxu0 0
    %793 = vmatprep.subr.bf16.mxu0 0
    %794 = vmatpush1.bf16.msra.mxu0 0
    %795 = vmatprep.subr.bf16.mxu0 0
    %796 = vmatpush1.bf16.msra.mxu0 0
    %797 = vmatprep.subr.bf16.mxu0 0
    %798 = vmatpush1.bf16.msra.mxu0 0
    %799 = vmatprep.subr.bf16.mxu0 0
    %800 = vmatpush1.bf16.msra.mxu0 0
    %801 = vmatprep.subr.bf16.mxu0 0
    %802 = vmatpush1.bf16.msra.mxu0 0
    %803 = vmatprep.subr.bf16.mxu0 0
    %804 = vmatpush1.bf16.msra.mxu0 0
    %805 = vmatprep.subr.bf16.mxu0 0
    %806 = vmatpush1.bf16.msra.mxu0 0
    %807 = vmatprep.subr.bf16.mxu0 0
    %808 = vmatpush1.bf16.msra.mxu0 0
    %809 = vmatprep.subr.bf16.mxu0 0
    %810 = vmatpush1.bf16.msra.mxu0 0
    %811 = vmatprep.mubr.bf16.mxu0 0
    %812 = vmatmul.mubr.bf16.gmra.mrb[0].mxu0 %v777
    %v813 = vpop.f32.mrb[0].mxu0
    %v814 = vadd.f32 %v155, %v813
    %v815 = vpop.f32.mrb[0].mxu0
    %v816 = vpop.f32.mrb[0].mxu0
    %v817 = vadd.f32 %v155, %v816
    %v818 = vpop.f32.mrb[0].mxu0
    %819 = vdwg.mxu0
    %820 = vmatprep.subr.bf16.mxu0 0
    %821 = vmatpush1.bf16.msra.mxu0 %v240
    %822 = vmatprep.subr.bf16.mxu0 0
    %823 = vmatpush1.bf16.msra.mxu0 %v241
    %824 = vmatprep.subr.bf16.mxu0 0
    %825 = vmatpush1.bf16.msra.mxu0 %v242
    %826 = vmatprep.subr.bf16.mxu0 0
    %827 = vmatpush1.bf16.msra.mxu0 %v243
    %828 = vmatprep.subr.bf16.mxu0 0
    %829 = vmatpush1.bf16.msra.mxu0 %v244
    %830 = vmatprep.subr.bf16.mxu0 0
    %831 = vmatpush1.bf16.msra.mxu0 %v245
    %832 = vmatprep.subr.bf16.mxu0 0
    %833 = vmatpush1.bf16.msra.mxu0 %v246
    %834 = vmatprep.subr.bf16.mxu0 0
    %835 = vmatpush1.bf16.msra.mxu0 %v247
    %836 = vmatprep.subr.bf16.mxu0 0
    %837 = vmatpush1.bf16.msra.mxu0 0
    %838 = vmatprep.subr.bf16.mxu0 0
    %839 = vmatpush1.bf16.msra.mxu0 0
    %840 = vmatprep.subr.bf16.mxu0 0
    %841 = vmatpush1.bf16.msra.mxu0 0
    %842 = vmatprep.subr.bf16.mxu0 0
    %843 = vmatpush1.bf16.msra.mxu0 0
    %844 = vmatprep.subr.bf16.mxu0 0
    %845 = vmatpush1.bf16.msra.mxu0 0
    %846 = vmatprep.subr.bf16.mxu0 0
    %847 = vmatpush1.bf16.msra.mxu0 0
    %848 = vmatprep.subr.bf16.mxu0 0
    %849 = vmatpush1.bf16.msra.mxu0 0
    %850 = vmatprep.subr.bf16.mxu0 0
    %851 = vmatpush1.bf16.msra.mxu0 0
    %852 = vmatprep.mubr.bf16.mxu0 0
    %853 = vmatmul.mubr.bf16.gmra.mrb[0].mxu0 %v771
    %v854 = vpop.f32.mrb[0].mxu0
    %v855 = vadd.f32 0.0, %v854
    %v856 = vpop.f32.mrb[0].mxu0
    %v857 = vpop.f32.mrb[0].mxu0
    %v858 = vadd.f32 0.0, %v857
    %v859 = vpop.f32.mrb[0].mxu0
    %860 = vdwg.mxu0
    %v861 = vadd.f32 %v814, %v855
    %v862 = vadd.f32 %v817, %v858
    %v863 = vtanh.pop %v861
    %v864 = vtanh.pop %v862
    %v865 = vpack.c.bf16 %v864, %v863
    %s866 = scalar_lea.vmem [#allocation4], 112
    %v867 = vld [vmem:[%s866] sm:$0xff]
    %v868 = vld [vmem:[%s866 + $0x8] sm:$0xff]
    %v869 = vpack.c.bf16 %v868, %v867
    %v871 = vsel %vm163, %v869, 0
    %873 = vmatprep.subr.bf16.mxu0 0
    %874 = vmatpush1.bf16.msra.mxu0 %v161
    %875 = vmatprep.subr.bf16.mxu0 0
    %876 = vmatpush1.bf16.msra.mxu0 0
    %877 = vmatprep.subr.bf16.mxu0 0
    %878 = vmatpush1.bf16.msra.mxu0 0
    %879 = vmatprep.subr.bf16.mxu0 0
    %880 = vmatpush1.bf16.msra.mxu0 0
    %881 = vmatprep.subr.bf16.mxu0 0
    %882 = vmatpush1.bf16.msra.mxu0 0
    %883 = vmatprep.subr.bf16.mxu0 0
    %884 = vmatpush1.bf16.msra.mxu0 0
    %885 = vmatprep.subr.bf16.mxu0 0
    %886 = vmatpush1.bf16.msra.mxu0 0
    %887 = vmatprep.subr.bf16.mxu0 0
    %888 = vmatpush1.bf16.msra.mxu0 0
    %889 = vmatprep.subr.bf16.mxu0 0
    %890 = vmatpush1.bf16.msra.mxu0 0
    %891 = vmatprep.subr.bf16.mxu0 0
    %892 = vmatpush1.bf16.msra.mxu0 0
    %893 = vmatprep.subr.bf16.mxu0 0
    %894 = vmatpush1.bf16.msra.mxu0 0
    %895 = vmatprep.subr.bf16.mxu0 0
    %896 = vmatpush1.bf16.msra.mxu0 0
    %897 = vmatprep.subr.bf16.mxu0 0
    %898 = vmatpush1.bf16.msra.mxu0 0
    %899 = vmatprep.subr.bf16.mxu0 0
    %900 = vmatpush1.bf16.msra.mxu0 0
    %901 = vmatprep.subr.bf16.mxu0 0
    %902 = vmatpush1.bf16.msra.mxu0 0
    %903 = vmatprep.subr.bf16.mxu0 0
    %904 = vmatpush1.bf16.msra.mxu0 0
    %905 = vmatprep.mubr.bf16.mxu0 0
    %906 = vmatmul.mubr.bf16.gmra.mrb[0].mxu0 %v871
    %v907 = vpop.f32.mrb[0].mxu0
    %v908 = vadd.f32 %v155, %v907
    %v909 = vpop.f32.mrb[0].mxu0
    %v910 = vpop.f32.mrb[0].mxu0
    %v911 = vadd.f32 %v155, %v910
    %v912 = vpop.f32.mrb[0].mxu0
    %913 = vdwg.mxu0
    %914 = vmatprep.subr.bf16.mxu0 0
    %915 = vmatpush1.bf16.msra.mxu0 %v240
    %916 = vmatprep.subr.bf16.mxu0 0
    %917 = vmatpush1.bf16.msra.mxu0 %v241
    %918 = vmatprep.subr.bf16.mxu0 0
    %919 = vmatpush1.bf16.msra.mxu0 %v242
    %920 = vmatprep.subr.bf16.mxu0 0
    %921 = vmatpush1.bf16.msra.mxu0 %v243
    %922 = vmatprep.subr.bf16.mxu0 0
    %923 = vmatpush1.bf16.msra.mxu0 %v244
    %924 = vmatprep.subr.bf16.mxu0 0
    %925 = vmatpush1.bf16.msra.mxu0 %v245
    %926 = vmatprep.subr.bf16.mxu0 0
    %927 = vmatpush1.bf16.msra.mxu0 %v246
    %928 = vmatprep.subr.bf16.mxu0 0
    %929 = vmatpush1.bf16.msra.mxu0 %v247
    %930 = vmatprep.subr.bf16.mxu0 0
    %931 = vmatpush1.bf16.msra.mxu0 0
    %932 = vmatprep.subr.bf16.mxu0 0
    %933 = vmatpush1.bf16.msra.mxu0 0
    %934 = vmatprep.subr.bf16.mxu0 0
    %935 = vmatpush1.bf16.msra.mxu0 0
    %936 = vmatprep.subr.bf16.mxu0 0
    %937 = vmatpush1.bf16.msra.mxu0 0
    %938 = vmatprep.subr.bf16.mxu0 0
    %939 = vmatpush1.bf16.msra.mxu0 0
    %940 = vmatprep.subr.bf16.mxu0 0
    %941 = vmatpush1.bf16.msra.mxu0 0
    %942 = vmatprep.subr.bf16.mxu0 0
    %943 = vmatpush1.bf16.msra.mxu0 0
    %944 = vmatprep.subr.bf16.mxu0 0
    %945 = vmatpush1.bf16.msra.mxu0 0
    %946 = vmatprep.mubr.bf16.mxu0 0
    %947 = vmatmul.mubr.bf16.gmra.mrb[0].mxu0 %v865
    %v948 = vpop.f32.mrb[0].mxu0
    %v949 = vadd.f32 0.0, %v948
    %v950 = vpop.f32.mrb[0].mxu0
    %v951 = vpop.f32.mrb[0].mxu0
    %v952 = vadd.f32 0.0, %v951
    %v953 = vpop.f32.mrb[0].mxu0
    %954 = vdwg.mxu0
    %v955 = vadd.f32 %v908, %v949
    %v956 = vadd.f32 %v911, %v952
    %v957 = vtanh.pop %v955
    %v958 = vtanh.pop %v956
    %v959 = vpack.c.bf16 %v958, %v957
    %960 = vst [vmem:[#allocation2] sm:$0xff] %v957
    %961 = vst [vmem:[#allocation2 + $0x8] sm:$0xff] %v958
    %v962 = vld [vmem:[#allocation3] sm:$0xff]
    %v963 = vld [vmem:[#allocation3 + $0x8] sm:$0xff]
    %v964 = vld [vmem:[#allocation12] sm:$0xf]
    %v965 = vld [vmem:[#allocation12 + $0x4] sm:$0xf]
    %v966 = vld [vmem:[#allocation12 + $0x8] sm:$0xf]
    %v967 = vld [vmem:[#allocation12 + $0xc] sm:$0xf]
    %v968 = vld [vmem:[#allocation12 + $0x10] sm:$0xf]
    %v969 = vld [vmem:[#allocation12 + $0x14] sm:$0xf]
    %v970 = vld [vmem:[#allocation12 + $0x18] sm:$0xf]
    %v971 = vld [vmem:[#allocation12 + $0x1c] sm:$0xf]
    %v972 = vld [vmem:[#allocation12 + $0x20] sm:$0xf]
    %v973 = vld [vmem:[#allocation12 + $0x24] sm:$0xf]
    %v974 = vld [vmem:[#allocation12 + $0x28] sm:$0xf]
    %v975 = vld [vmem:[#allocation12 + $0x2c] sm:$0xf]
    %v976 = vld [vmem:[#allocation12 + $0x30] sm:$0xf]
    %v977 = vld [vmem:[#allocation12 + $0x34] sm:$0xf]
    %v978 = vld [vmem:[#allocation12 + $0x38] sm:$0xf]
    %v979 = vld [vmem:[#allocation12 + $0x3c] sm:$0xf]
    %v980 = vld [vmem:[#allocation12 + $0x40] sm:$0xf]
    %v981 = vld [vmem:[#allocation12 + $0x44] sm:$0xf]
    %v982 = vld [vmem:[#allocation12 + $0x48] sm:$0xf]
    %v983 = vld [vmem:[#allocation12 + $0x4c] sm:$0xf]
    %v984 = vld [vmem:[#allocation12 + $0x50] sm:$0xf]
    %v985 = vld [vmem:[#allocation12 + $0x54] sm:$0xf]
    %v986 = vld [vmem:[#allocation12 + $0x58] sm:$0xf]
    %v987 = vld [vmem:[#allocation12 + $0x5c] sm:$0xf]
    %v988 = vld [vmem:[#allocation12 + $0x60] sm:$0xf]
    %v989 = vld [vmem:[#allocation12 + $0x64] sm:$0xf]
    %v990 = vld [vmem:[#allocation12 + $0x68] sm:$0xf]
    %v991 = vld [vmem:[#allocation12 + $0x6c] sm:$0xf]
    %v992 = vld [vmem:[#allocation12 + $0x70] sm:$0xf]
    %v993 = vld [vmem:[#allocation12 + $0x74] sm:$0xf]
    %v994 = vld [vmem:[#allocation12 + $0x78] sm:$0xf]
    %v995 = vld [vmem:[#allocation12 + $0x7c] sm:$0xf]
    %v996 = vld [vmem:[#allocation12 + $0x80] sm:$0xf]
    %v997 = vld [vmem:[#allocation12 + $0x84] sm:$0xf]
    %v998 = vld [vmem:[#allocation12 + $0x88] sm:$0xf]
    %v999 = vld [vmem:[#allocation12 + $0x8c] sm:$0xf]
    %v1000 = vld [vmem:[#allocation12 + $0x90] sm:$0xf]
    %v1001 = vld [vmem:[#allocation12 + $0x94] sm:$0xf]
    %v1002 = vld [vmem:[#allocation12 + $0x98] sm:$0xf]
    %v1003 = vld [vmem:[#allocation12 + $0x9c] sm:$0xf]
    %v1004 = vld [vmem:[#allocation12 + $0xa0] sm:$0xf]
    %v1005 = vld [vmem:[#allocation12 + $0xa4] sm:$0xf]
    %v1006 = vld [vmem:[#allocation12 + $0xa8] sm:$0xf]
    %v1007 = vld [vmem:[#allocation12 + $0xac] sm:$0xf]
    %v1008 = vld [vmem:[#allocation12 + $0xb0] sm:$0xf]
    %v1009 = vld [vmem:[#allocation12 + $0xb4] sm:$0xf]
    %v1010 = vld [vmem:[#allocation12 + $0xb8] sm:$0xf]
    %v1011 = vld [vmem:[#allocation12 + $0xbc] sm:$0xf]
    %v1012 = vld [vmem:[#allocation12 + $0xc0] sm:$0xf]
    %v1013 = vld [vmem:[#allocation12 + $0xc4] sm:$0xf]
    %v1014 = vld [vmem:[#allocation12 + $0xc8] sm:$0xf]
    %v1015 = vld [vmem:[#allocation12 + $0xcc] sm:$0xf]
    %v1016 = vld [vmem:[#allocation12 + $0xd0] sm:$0xf]
    %v1017 = vld [vmem:[#allocation12 + $0xd4] sm:$0xf]
    %v1018 = vld [vmem:[#allocation12 + $0xd8] sm:$0xf]
    %v1019 = vld [vmem:[#allocation12 + $0xdc] sm:$0xf]
    %v1020 = vld [vmem:[#allocation12 + $0xe0] sm:$0xf]
    %v1021 = vld [vmem:[#allocation12 + $0xe4] sm:$0xf]
    %v1022 = vld [vmem:[#allocation12 + $0xe8] sm:$0xf]
    %v1023 = vld [vmem:[#allocation12 + $0xec] sm:$0xf]
    %v1024 = vld [vmem:[#allocation12 + $0xf0] sm:$0xf]
    %v1025 = vld [vmem:[#allocation12 + $0xf4] sm:$0xf]
    %v1026 = vld [vmem:[#allocation12 + $0xf8] sm:$0xf]
    %v1027 = vld [vmem:[#allocation12 + $0xfc] sm:$0xf]
    %v1028 = vld [vmem:[#allocation12 + $0x100] sm:$0xf]
    %v1029 = vld [vmem:[#allocation12 + $0x104] sm:$0xf]
    %v1030 = vld [vmem:[#allocation12 + $0x108] sm:$0xf]
    %v1031 = vld [vmem:[#allocation12 + $0x10c] sm:$0xf]
    %v1032 = vld [vmem:[#allocation12 + $0x110] sm:$0xf]
    %v1033 = vld [vmem:[#allocation12 + $0x114] sm:$0xf]
    %v1034 = vld [vmem:[#allocation12 + $0x118] sm:$0xf]
    %v1035 = vld [vmem:[#allocation12 + $0x11c] sm:$0xf]
    %v1036 = vld [vmem:[#allocation12 + $0x120] sm:$0xf]
    %v1037 = vld [vmem:[#allocation12 + $0x124] sm:$0xf]
    %v1038 = vld [vmem:[#allocation12 + $0x128] sm:$0xf]
    %v1039 = vld [vmem:[#allocation12 + $0x12c] sm:$0xf]
    %v1040 = vld [vmem:[#allocation12 + $0x130] sm:$0xf]
    %v1041 = vld [vmem:[#allocation12 + $0x134] sm:$0xf]
    %v1042 = vld [vmem:[#allocation12 + $0x138] sm:$0xf]
    %v1043 = vld [vmem:[#allocation12 + $0x13c] sm:$0xf]
    %v1044 = vld [vmem:[#allocation12 + $0x140] sm:$0xf]
    %v1045 = vld [vmem:[#allocation12 + $0x144] sm:$0xf]
    %v1046 = vld [vmem:[#allocation12 + $0x148] sm:$0xf]
    %v1047 = vld [vmem:[#allocation12 + $0x14c] sm:$0xf]
    %v1048 = vld [vmem:[#allocation12 + $0x150] sm:$0xf]
    %v1049 = vld [vmem:[#allocation12 + $0x154] sm:$0xf]
    %v1050 = vld [vmem:[#allocation12 + $0x158] sm:$0xf]
    %v1051 = vld [vmem:[#allocation12 + $0x15c] sm:$0xf]
    %v1052 = vld [vmem:[#allocation12 + $0x160] sm:$0xf]
    %v1053 = vld [vmem:[#allocation12 + $0x164] sm:$0xf]
    %v1054 = vld [vmem:[#allocation12 + $0x168] sm:$0xf]
    %v1055 = vld [vmem:[#allocation12 + $0x16c] sm:$0xf]
    %v1056 = vld [vmem:[#allocation12 + $0x170] sm:$0xf]
    %v1057 = vld [vmem:[#allocation12 + $0x174] sm:$0xf]
    %v1058 = vld [vmem:[#allocation12 + $0x178] sm:$0xf]
    %v1059 = vld [vmem:[#allocation12 + $0x17c] sm:$0xf]
    %v1060 = vld [vmem:[#allocation12 + $0x180] sm:$0xf]
    %v1061 = vld [vmem:[#allocation12 + $0x184] sm:$0xf]
    %v1062 = vld [vmem:[#allocation12 + $0x188] sm:$0xf]
    %v1063 = vld [vmem:[#allocation12 + $0x18c] sm:$0xf]
    %v1064 = vld [vmem:[#allocation12 + $0x190] sm:$0xf]
    %v1065 = vld [vmem:[#allocation12 + $0x194] sm:$0xf]
    %v1066 = vld [vmem:[#allocation12 + $0x198] sm:$0xf]
    %v1067 = vld [vmem:[#allocation12 + $0x19c] sm:$0xf]
    %v1068 = vld [vmem:[#allocation12 + $0x1a0] sm:$0xf]
    %v1069 = vld [vmem:[#allocation12 + $0x1a4] sm:$0xf]
    %v1070 = vld [vmem:[#allocation12 + $0x1a8] sm:$0xf]
    %v1071 = vld [vmem:[#allocation12 + $0x1ac] sm:$0xf]
    %v1072 = vld [vmem:[#allocation12 + $0x1b0] sm:$0xf]
    %v1073 = vld [vmem:[#allocation12 + $0x1b4] sm:$0xf]
    %v1074 = vld [vmem:[#allocation12 + $0x1b8] sm:$0xf]
    %v1075 = vld [vmem:[#allocation12 + $0x1bc] sm:$0xf]
    %v1076 = vld [vmem:[#allocation12 + $0x1c0] sm:$0xf]
    %v1077 = vld [vmem:[#allocation12 + $0x1c4] sm:$0xf]
    %v1078 = vld [vmem:[#allocation12 + $0x1c8] sm:$0xf]
    %v1079 = vld [vmem:[#allocation12 + $0x1cc] sm:$0xf]
    %v1080 = vld [vmem:[#allocation12 + $0x1d0] sm:$0xf]
    %v1081 = vld [vmem:[#allocation12 + $0x1d4] sm:$0xf]
    %v1082 = vld [vmem:[#allocation12 + $0x1d8] sm:$0xf]
    %v1083 = vld [vmem:[#allocation12 + $0x1dc] sm:$0xf]
    %v1084 = vld [vmem:[#allocation12 + $0x1e0] sm:$0xf]
    %v1085 = vld [vmem:[#allocation12 + $0x1e4] sm:$0xf]
    %v1086 = vld [vmem:[#allocation12 + $0x1e8] sm:$0xf]
    %v1087 = vld [vmem:[#allocation12 + $0x1ec] sm:$0xf]
    %v1088 = vld [vmem:[#allocation12 + $0x1f0] sm:$0xf]
    %v1089 = vld [vmem:[#allocation12 + $0x1f4] sm:$0xf]
    %v1090 = vld [vmem:[#allocation12 + $0x1f8] sm:$0xf]
    %v1091 = vld [vmem:[#allocation12 + $0x1fc] sm:$0xf]
    %v1220 = vunpack.c.l.b16 %v964
    %v1221 = vunpack.c.l.b16 %v965
    %v1222 = vunpack.c.l.b16 %v966
    %v1223 = vunpack.c.l.b16 %v967
    %v1224 = vunpack.c.l.b16 %v968
    %v1225 = vunpack.c.l.b16 %v969
    %v1226 = vunpack.c.l.b16 %v970
    %v1227 = vunpack.c.l.b16 %v971
    %v1228 = vunpack.c.l.b16 %v972
    %v1229 = vunpack.c.l.b16 %v973
    %v1230 = vunpack.c.l.b16 %v974
    %v1231 = vunpack.c.l.b16 %v975
    %v1232 = vunpack.c.l.b16 %v976
    %v1233 = vunpack.c.l.b16 %v977
    %v1234 = vunpack.c.l.b16 %v978
    %v1235 = vunpack.c.l.b16 %v979
    %v1236 = vunpack.c.l.b16 %v980
    %v1237 = vunpack.c.l.b16 %v981
    %v1238 = vunpack.c.l.b16 %v982
    %v1239 = vunpack.c.l.b16 %v983
    %v1240 = vunpack.c.l.b16 %v984
    %v1241 = vunpack.c.l.b16 %v985
    %v1242 = vunpack.c.l.b16 %v986
    %v1243 = vunpack.c.l.b16 %v987
    %v1244 = vunpack.c.l.b16 %v988
    %v1245 = vunpack.c.l.b16 %v989
    %v1246 = vunpack.c.l.b16 %v990
    %v1247 = vunpack.c.l.b16 %v991
    %v1248 = vunpack.c.l.b16 %v992
    %v1249 = vunpack.c.l.b16 %v993
    %v1250 = vunpack.c.l.b16 %v994
    %v1251 = vunpack.c.l.b16 %v995
    %v1252 = vunpack.c.l.b16 %v996
    %v1253 = vunpack.c.l.b16 %v997
    %v1254 = vunpack.c.l.b16 %v998
    %v1255 = vunpack.c.l.b16 %v999
    %v1256 = vunpack.c.l.b16 %v1000
    %v1257 = vunpack.c.l.b16 %v1001
    %v1258 = vunpack.c.l.b16 %v1002
    %v1259 = vunpack.c.l.b16 %v1003
    %v1260 = vunpack.c.l.b16 %v1004
    %v1261 = vunpack.c.l.b16 %v1005
    %v1262 = vunpack.c.l.b16 %v1006
    %v1263 = vunpack.c.l.b16 %v1007
    %v1264 = vunpack.c.l.b16 %v1008
    %v1265 = vunpack.c.l.b16 %v1009
    %v1266 = vunpack.c.l.b16 %v1010
    %v1267 = vunpack.c.l.b16 %v1011
    %v1268 = vunpack.c.l.b16 %v1012
    %v1269 = vunpack.c.l.b16 %v1013
    %v1270 = vunpack.c.l.b16 %v1014
    %v1271 = vunpack.c.l.b16 %v1015
    %v1272 = vunpack.c.l.b16 %v1016
    %v1273 = vunpack.c.l.b16 %v1017
    %v1274 = vunpack.c.l.b16 %v1018
    %v1275 = vunpack.c.l.b16 %v1019
    %v1276 = vunpack.c.l.b16 %v1020
    %v1277 = vunpack.c.l.b16 %v1021
    %v1278 = vunpack.c.l.b16 %v1022
    %v1279 = vunpack.c.l.b16 %v1023
    %v1280 = vunpack.c.l.b16 %v1024
    %v1281 = vunpack.c.l.b16 %v1025
    %v1282 = vunpack.c.l.b16 %v1026
    %v1283 = vunpack.c.l.b16 %v1027
    %v1284 = vunpack.c.l.b16 %v1028
    %v1285 = vunpack.c.l.b16 %v1029
    %v1286 = vunpack.c.l.b16 %v1030
    %v1287 = vunpack.c.l.b16 %v1031
    %v1288 = vunpack.c.l.b16 %v1032
    %v1289 = vunpack.c.l.b16 %v1033
    %v1290 = vunpack.c.l.b16 %v1034
    %v1291 = vunpack.c.l.b16 %v1035
    %v1292 = vunpack.c.l.b16 %v1036
    %v1293 = vunpack.c.l.b16 %v1037
    %v1294 = vunpack.c.l.b16 %v1038
    %v1295 = vunpack.c.l.b16 %v1039
    %v1296 = vunpack.c.l.b16 %v1040
    %v1297 = vunpack.c.l.b16 %v1041
    %v1298 = vunpack.c.l.b16 %v1042
    %v1299 = vunpack.c.l.b16 %v1043
    %v1300 = vunpack.c.l.b16 %v1044
    %v1301 = vunpack.c.l.b16 %v1045
    %v1302 = vunpack.c.l.b16 %v1046
    %v1303 = vunpack.c.l.b16 %v1047
    %v1304 = vunpack.c.l.b16 %v1048
    %v1305 = vunpack.c.l.b16 %v1049
    %v1306 = vunpack.c.l.b16 %v1050
    %v1307 = vunpack.c.l.b16 %v1051
    %v1308 = vunpack.c.l.b16 %v1052
    %v1309 = vunpack.c.l.b16 %v1053
    %v1310 = vunpack.c.l.b16 %v1054
    %v1311 = vunpack.c.l.b16 %v1055
    %v1312 = vunpack.c.l.b16 %v1056
    %v1313 = vunpack.c.l.b16 %v1057
    %v1314 = vunpack.c.l.b16 %v1058
    %v1315 = vunpack.c.l.b16 %v1059
    %v1316 = vunpack.c.l.b16 %v1060
    %v1317 = vunpack.c.l.b16 %v1061
    %v1318 = vunpack.c.l.b16 %v1062
    %v1319 = vunpack.c.l.b16 %v1063
    %v1320 = vunpack.c.l.b16 %v1064
    %v1321 = vunpack.c.l.b16 %v1065
    %v1322 = vunpack.c.l.b16 %v1066
    %v1323 = vunpack.c.l.b16 %v1067
    %v1324 = vunpack.c.l.b16 %v1068
    %v1325 = vunpack.c.l.b16 %v1069
    %v1326 = vunpack.c.l.b16 %v1070
    %v1327 = vunpack.c.l.b16 %v1071
    %v1328 = vunpack.c.l.b16 %v1072
    %v1329 = vunpack.c.l.b16 %v1073
    %v1330 = vunpack.c.l.b16 %v1074
    %v1331 = vunpack.c.l.b16 %v1075
    %v1332 = vunpack.c.l.b16 %v1076
    %v1333 = vunpack.c.l.b16 %v1077
    %v1334 = vunpack.c.l.b16 %v1078
    %v1335 = vunpack.c.l.b16 %v1079
    %v1336 = vunpack.c.l.b16 %v1080
    %v1337 = vunpack.c.l.b16 %v1081
    %v1338 = vunpack.c.l.b16 %v1082
    %v1339 = vunpack.c.l.b16 %v1083
    %v1340 = vunpack.c.l.b16 %v1084
    %v1341 = vunpack.c.l.b16 %v1085
    %v1342 = vunpack.c.l.b16 %v1086
    %v1343 = vunpack.c.l.b16 %v1087
    %v1344 = vunpack.c.l.b16 %v1088
    %v1345 = vunpack.c.l.b16 %v1089
    %v1346 = vunpack.c.l.b16 %v1090
    %v1347 = vunpack.c.l.b16 %v1091
    %v1348 = vpack.c.b16 %v1221, %v1220
    %v1349 = vpack.c.b16 %v1223, %v1222
    %v1350 = vpack.c.b16 %v1225, %v1224
    %v1351 = vpack.c.b16 %v1227, %v1226
    %v1352 = vpack.c.b16 %v1229, %v1228
    %v1353 = vpack.c.b16 %v1231, %v1230
    %v1354 = vpack.c.b16 %v1233, %v1232
    %v1355 = vpack.c.b16 %v1235, %v1234
    %v1356 = vpack.c.b16 %v1237, %v1236
    %v1357 = vpack.c.b16 %v1239, %v1238
    %v1358 = vpack.c.b16 %v1241, %v1240
    %v1359 = vpack.c.b16 %v1243, %v1242
    %v1360 = vpack.c.b16 %v1245, %v1244
    %v1361 = vpack.c.b16 %v1247, %v1246
    %v1362 = vpack.c.b16 %v1249, %v1248
    %v1363 = vpack.c.b16 %v1251, %v1250
    %v1364 = vpack.c.b16 %v1253, %v1252
    %v1365 = vpack.c.b16 %v1255, %v1254
    %v1366 = vpack.c.b16 %v1257, %v1256
    %v1367 = vpack.c.b16 %v1259, %v1258
    %v1368 = vpack.c.b16 %v1261, %v1260
    %v1369 = vpack.c.b16 %v1263, %v1262
    %v1370 = vpack.c.b16 %v1265, %v1264
    %v1371 = vpack.c.b16 %v1267, %v1266
    %v1372 = vpack.c.b16 %v1269, %v1268
    %v1373 = vpack.c.b16 %v1271, %v1270
    %v1374 = vpack.c.b16 %v1273, %v1272
    %v1375 = vpack.c.b16 %v1275, %v1274
    %v1376 = vpack.c.b16 %v1277, %v1276
    %v1377 = vpack.c.b16 %v1279, %v1278
    %v1378 = vpack.c.b16 %v1281, %v1280
    %v1379 = vpack.c.b16 %v1283, %v1282
    %v1380 = vpack.c.b16 %v1285, %v1284
    %v1381 = vpack.c.b16 %v1287, %v1286
    %v1382 = vpack.c.b16 %v1289, %v1288
    %v1383 = vpack.c.b16 %v1291, %v1290
    %v1384 = vpack.c.b16 %v1293, %v1292
    %v1385 = vpack.c.b16 %v1295, %v1294
    %v1386 = vpack.c.b16 %v1297, %v1296
    %v1387 = vpack.c.b16 %v1299, %v1298
    %v1388 = vpack.c.b16 %v1301, %v1300
    %v1389 = vpack.c.b16 %v1303, %v1302
    %v1390 = vpack.c.b16 %v1305, %v1304
    %v1391 = vpack.c.b16 %v1307, %v1306
    %v1392 = vpack.c.b16 %v1309, %v1308
    %v1393 = vpack.c.b16 %v1311, %v1310
    %v1394 = vpack.c.b16 %v1313, %v1312
    %v1395 = vpack.c.b16 %v1315, %v1314
    %v1396 = vpack.c.b16 %v1317, %v1316
    %v1397 = vpack.c.b16 %v1319, %v1318
    %v1398 = vpack.c.b16 %v1321, %v1320
    %v1399 = vpack.c.b16 %v1323, %v1322
    %v1400 = vpack.c.b16 %v1325, %v1324
    %v1401 = vpack.c.b16 %v1327, %v1326
    %v1402 = vpack.c.b16 %v1329, %v1328
    %v1403 = vpack.c.b16 %v1331, %v1330
    %v1404 = vpack.c.b16 %v1333, %v1332
    %v1405 = vpack.c.b16 %v1335, %v1334
    %v1406 = vpack.c.b16 %v1337, %v1336
    %v1407 = vpack.c.b16 %v1339, %v1338
    %v1408 = vpack.c.b16 %v1341, %v1340
    %v1409 = vpack.c.b16 %v1343, %v1342
    %v1410 = vpack.c.b16 %v1345, %v1344
    %v1411 = vpack.c.b16 %v1347, %v1346
    %1476 = vmatprep.subr.bf16.mxu0 0
    %1477 = vmatpush1.bf16.msra.mxu0 %v1348
    %1478 = vmatprep.subr.bf16.mxu0 0
    %1479 = vmatpush1.bf16.msra.mxu0 %v1349
    %1480 = vmatprep.subr.bf16.mxu0 0
    %1481 = vmatpush1.bf16.msra.mxu0 %v1350
    %1482 = vmatprep.subr.bf16.mxu0 0
    %1483 = vmatpush1.bf16.msra.mxu0 %v1351
    %1484 = vmatprep.subr.bf16.mxu0 0
    %1485 = vmatpush1.bf16.msra.mxu0 %v1352
    %1486 = vmatprep.subr.bf16.mxu0 0
    %1487 = vmatpush1.bf16.msra.mxu0 %v1353
    %1488 = vmatprep.subr.bf16.mxu0 0
    %1489 = vmatpush1.bf16.msra.mxu0 %v1354
    %1490 = vmatprep.subr.bf16.mxu0 0
    %1491 = vmatpush1.bf16.msra.mxu0 %v1355
    %1492 = vmatprep.subr.bf16.mxu0 0
    %1493 = vmatpush1.bf16.msra.mxu0 %v1356
    %1494 = vmatprep.subr.bf16.mxu0 0
    %1495 = vmatpush1.bf16.msra.mxu0 %v1357
    %1496 = vmatprep.subr.bf16.mxu0 0
    %1497 = vmatpush1.bf16.msra.mxu0 %v1358
    %1498 = vmatprep.subr.bf16.mxu0 0
    %1499 = vmatpush1.bf16.msra.mxu0 %v1359
    %1500 = vmatprep.subr.bf16.mxu0 0
    %1501 = vmatpush1.bf16.msra.mxu0 %v1360
    %1502 = vmatprep.subr.bf16.mxu0 0
    %1503 = vmatpush1.bf16.msra.mxu0 %v1361
    %1504 = vmatprep.subr.bf16.mxu0 0
    %1505 = vmatpush1.bf16.msra.mxu0 %v1362
    %1506 = vmatprep.subr.bf16.mxu0 0
    %1507 = vmatpush1.bf16.msra.mxu0 %v1363
    %1508 = vmatprep.mubr.bf16.mxu0 %v395
    %1509 = vmatmul.mubr.bf16.gmra.mrb[0].mxu0 %v301
    %v1510 = vpop.f32.mrb[0].mxu0
    %v1511 = vadd.f32 0.0, %v1510
    %v1512 = vpop.f32.mrb[0].mxu0
    %v1513 = vpop.f32.mrb[0].mxu0
    %v1514 = vadd.f32 0.0, %v1513
    %v1515 = vpop.f32.mrb[0].mxu0
    %1516 = vdwg.mxu0
    %1517 = vmatprep.subr.bf16.mxu0 0
    %1518 = vmatpush1.bf16.msra.mxu0 %v1364
    %1519 = vmatprep.subr.bf16.mxu0 0
    %1520 = vmatpush1.bf16.msra.mxu0 %v1365
    %1521 = vmatprep.subr.bf16.mxu0 0
    %1522 = vmatpush1.bf16.msra.mxu0 %v1366
    %1523 = vmatprep.subr.bf16.mxu0 0
    %1524 = vmatpush1.bf16.msra.mxu0 %v1367
    %1525 = vmatprep.subr.bf16.mxu0 0
    %1526 = vmatpush1.bf16.msra.mxu0 %v1368
    %1527 = vmatprep.subr.bf16.mxu0 0
    %1528 = vmatpush1.bf16.msra.mxu0 %v1369
    %1529 = vmatprep.subr.bf16.mxu0 0
    %1530 = vmatpush1.bf16.msra.mxu0 %v1370
    %1531 = vmatprep.subr.bf16.mxu0 0
    %1532 = vmatpush1.bf16.msra.mxu0 %v1371
    %1533 = vmatprep.subr.bf16.mxu0 0
    %1534 = vmatpush1.bf16.msra.mxu0 %v1372
    %1535 = vmatprep.subr.bf16.mxu0 0
    %1536 = vmatpush1.bf16.msra.mxu0 %v1373
    %1537 = vmatprep.subr.bf16.mxu0 0
    %1538 = vmatpush1.bf16.msra.mxu0 %v1374
    %1539 = vmatprep.subr.bf16.mxu0 0
    %1540 = vmatpush1.bf16.msra.mxu0 %v1375
    %1541 = vmatprep.subr.bf16.mxu0 0
    %1542 = vmatpush1.bf16.msra.mxu0 %v1376
    %1543 = vmatprep.subr.bf16.mxu0 0
    %1544 = vmatpush1.bf16.msra.mxu0 %v1377
    %1545 = vmatprep.subr.bf16.mxu0 0
    %1546 = vmatpush1.bf16.msra.mxu0 %v1378
    %1547 = vmatprep.subr.bf16.mxu0 0
    %1548 = vmatpush1.bf16.msra.mxu0 %v1379
    %1549 = vmatprep.mubr.bf16.mxu0 %v583
    %1550 = vmatmul.mubr.bf16.gmra.mrb[0].mxu0 %v489
    %v1551 = vpop.f32.mrb[0].mxu0
    %v1552 = vadd.f32 %v1511, %v1551
    %v1553 = vpop.f32.mrb[0].mxu0
    %v1554 = vpop.f32.mrb[0].mxu0
    %v1555 = vadd.f32 %v1514, %v1554
    %v1556 = vpop.f32.mrb[0].mxu0
    %1557 = vdwg.mxu0
    %1558 = vmatprep.subr.bf16.mxu0 0
    %1559 = vmatpush1.bf16.msra.mxu0 %v1380
    %1560 = vmatprep.subr.bf16.mxu0 0
    %1561 = vmatpush1.bf16.msra.mxu0 %v1381
    %1562 = vmatprep.subr.bf16.mxu0 0
    %1563 = vmatpush1.bf16.msra.mxu0 %v1382
    %1564 = vmatprep.subr.bf16.mxu0 0
    %1565 = vmatpush1.bf16.msra.mxu0 %v1383
    %1566 = vmatprep.subr.bf16.mxu0 0
    %1567 = vmatpush1.bf16.msra.mxu0 %v1384
    %1568 = vmatprep.subr.bf16.mxu0 0
    %1569 = vmatpush1.bf16.msra.mxu0 %v1385
    %1570 = vmatprep.subr.bf16.mxu0 0
    %1571 = vmatpush1.bf16.msra.mxu0 %v1386
    %1572 = vmatprep.subr.bf16.mxu0 0
    %1573 = vmatpush1.bf16.msra.mxu0 %v1387
    %1574 = vmatprep.subr.bf16.mxu0 0
    %1575 = vmatpush1.bf16.msra.mxu0 %v1388
    %1576 = vmatprep.subr.bf16.mxu0 0
    %1577 = vmatpush1.bf16.msra.mxu0 %v1389
    %1578 = vmatprep.subr.bf16.mxu0 0
    %1579 = vmatpush1.bf16.msra.mxu0 %v1390
    %1580 = vmatprep.subr.bf16.mxu0 0
    %1581 = vmatpush1.bf16.msra.mxu0 %v1391
    %1582 = vmatprep.subr.bf16.mxu0 0
    %1583 = vmatpush1.bf16.msra.mxu0 %v1392
    %1584 = vmatprep.subr.bf16.mxu0 0
    %1585 = vmatpush1.bf16.msra.mxu0 %v1393
    %1586 = vmatprep.subr.bf16.mxu0 0
    %1587 = vmatpush1.bf16.msra.mxu0 %v1394
    %1588 = vmatprep.subr.bf16.mxu0 0
    %1589 = vmatpush1.bf16.msra.mxu0 %v1395
    %1590 = vmatprep.mubr.bf16.mxu0 %v771
    %1591 = vmatmul.mubr.bf16.gmra.mrb[0].mxu0 %v677
    %v1592 = vpop.f32.mrb[0].mxu0
    %v1593 = vadd.f32 %v1552, %v1592
    %v1594 = vpop.f32.mrb[0].mxu0
    %v1595 = vpop.f32.mrb[0].mxu0
    %v1596 = vadd.f32 %v1555, %v1595
    %v1597 = vpop.f32.mrb[0].mxu0
    %1598 = vdwg.mxu0
    %1599 = vmatprep.subr.bf16.mxu0 0
    %1600 = vmatpush1.bf16.msra.mxu0 %v1396
    %1601 = vmatprep.subr.bf16.mxu0 0
    %1602 = vmatpush1.bf16.msra.mxu0 %v1397
    %1603 = vmatprep.subr.bf16.mxu0 0
    %1604 = vmatpush1.bf16.msra.mxu0 %v1398
    %1605 = vmatprep.subr.bf16.mxu0 0
    %1606 = vmatpush1.bf16.msra.mxu0 %v1399
    %1607 = vmatprep.subr.bf16.mxu0 0
    %1608 = vmatpush1.bf16.msra.mxu0 %v1400
    %1609 = vmatprep.subr.bf16.mxu0 0
    %1610 = vmatpush1.bf16.msra.mxu0 %v1401
    %1611 = vmatprep.subr.bf16.mxu0 0
    %1612 = vmatpush1.bf16.msra.mxu0 %v1402
    %1613 = vmatprep.subr.bf16.mxu0 0
    %1614 = vmatpush1.bf16.msra.mxu0 %v1403
    %1615 = vmatprep.subr.bf16.mxu0 0
    %1616 = vmatpush1.bf16.msra.mxu0 %v1404
    %1617 = vmatprep.subr.bf16.mxu0 0
    %1618 = vmatpush1.bf16.msra.mxu0 %v1405
    %1619 = vmatprep.subr.bf16.mxu0 0
    %1620 = vmatpush1.bf16.msra.mxu0 %v1406
    %1621 = vmatprep.subr.bf16.mxu0 0
    %1622 = vmatpush1.bf16.msra.mxu0 %v1407
    %1623 = vmatprep.subr.bf16.mxu0 0
    %1624 = vmatpush1.bf16.msra.mxu0 %v1408
    %1625 = vmatprep.subr.bf16.mxu0 0
    %1626 = vmatpush1.bf16.msra.mxu0 %v1409
    %1627 = vmatprep.subr.bf16.mxu0 0
    %1628 = vmatpush1.bf16.msra.mxu0 %v1410
    %1629 = vmatprep.subr.bf16.mxu0 0
    %1630 = vmatpush1.bf16.msra.mxu0 %v1411
    %1631 = vmatprep.mubr.bf16.mxu0 %v959
    %1632 = vmatmul.mubr.bf16.gmra.mrb[0].mxu0 %v865
    %v1633 = vpop.f32.mrb[0].mxu0
    %v1634 = vadd.f32 %v1593, %v1633
    %v1635 = vpop.f32.mrb[0].mxu0
    %v1636 = vpop.f32.mrb[0].mxu0
    %v1637 = vadd.f32 %v1596, %v1636
    %v1638 = vpop.f32.mrb[0].mxu0
    %1639 = vdwg.mxu0
    %v1640 = vadd.f32 %v962, %v1634
    %v1641 = vadd.f32 %v963, %v1637
    %1642 = vst [vmem:[#allocation3] sm:$0xff] %v1640
    %1643 = vst [vmem:[#allocation3 + $0x8] sm:$0xff] %v1641
    // Predicated region
    $region66: #{tpu_custom_call.1} parent=1 // pred_check
      %p1644 = pneg %p116
    $region67: #{tpu_custom_call.1} parent=1 // pred_check_branch
      %1646 = sbr.rel (%p1644) target = $region69
    $region68: #{tpu_custom_call.1} parent=1 // pred_region
      %v1647 = vld [vmem:[#allocation3] sm:$0xff]
      %v1648 = vld [vmem:[#allocation3 + $0x8] sm:$0xff]
      %v1649 = vld [vmem:[%s6] sm:$0x1]
      %v1651 = vlaneseq
      %v1652 = vshrl.u32 %v1651, 7
      %v1653 = vsub.s32 0, %v1652
      %v1654 = vrot.slane %v1649, %v1653
      %v1656 = vadd.f32 %v1647, %v1654
      %v1657 = vadd.f32 %v1648, %v1654
      %v1658 = vmax.f32 %v1656, 0.0
      %v1659 = vmax.f32 %v1657, 0.0
      %v1660 = vpack.c.bf16 %v1659, %v1658
      %v1661 = vld [vmem:[#allocation13] sm:$0xf]
      %v1662 = vld [vmem:[#allocation13 + $0x4] sm:$0xf]
      %v1663 = vld [vmem:[#allocation13 + $0x8] sm:$0xf]
      %v1664 = vld [vmem:[#allocation13 + $0xc] sm:$0xf]
      %v1665 = vld [vmem:[#allocation13 + $0x10] sm:$0xf]
      %v1666 = vld [vmem:[#allocation13 + $0x14] sm:$0xf]
      %v1667 = vld [vmem:[#allocation13 + $0x18] sm:$0xf]
      %v1668 = vld [vmem:[#allocation13 + $0x1c] sm:$0xf]
      %v1669 = vld [vmem:[#allocation13 + $0x20] sm:$0xf]
      %v1670 = vld [vmem:[#allocation13 + $0x24] sm:$0xf]
      %v1671 = vld [vmem:[#allocation13 + $0x28] sm:$0xf]
      %v1672 = vld [vmem:[#allocation13 + $0x2c] sm:$0xf]
      %v1673 = vld [vmem:[#allocation13 + $0x30] sm:$0xf]
      %v1674 = vld [vmem:[#allocation13 + $0x34] sm:$0xf]
      %v1675 = vld [vmem:[#allocation13 + $0x38] sm:$0xf]
      %v1676 = vld [vmem:[#allocation13 + $0x3c] sm:$0xf]
      %v1677 = vld [vmem:[%s8] sm:$0x1]
      %v1679 = vlaneseq
      %v1680 = vshrl.u32 %v1679, 7
      %v1681 = vsub.s32 0, %v1680
      %v1682 = vrot.slane %v1677, %v1681
      %v1700 = vunpack.c.l.b16 %v1661
      %v1701 = vunpack.c.l.b16 %v1662
      %v1702 = vunpack.c.l.b16 %v1663
      %v1703 = vunpack.c.l.b16 %v1664
      %v1704 = vunpack.c.l.b16 %v1665
      %v1705 = vunpack.c.l.b16 %v1666
      %v1706 = vunpack.c.l.b16 %v1667
      %v1707 = vunpack.c.l.b16 %v1668
      %v1708 = vunpack.c.l.b16 %v1669
      %v1709 = vunpack.c.l.b16 %v1670
      %v1710 = vunpack.c.l.b16 %v1671
      %v1711 = vunpack.c.l.b16 %v1672
      %v1712 = vunpack.c.l.b16 %v1673
      %v1713 = vunpack.c.l.b16 %v1674
      %v1714 = vunpack.c.l.b16 %v1675
      %v1715 = vunpack.c.l.b16 %v1676
      %v1716 = vpack.c.b16 %v1701, %v1700
      %v1717 = vpack.c.b16 %v1703, %v1702
      %v1718 = vpack.c.b16 %v1705, %v1704
      %v1719 = vpack.c.b16 %v1707, %v1706
      %v1720 = vpack.c.b16 %v1709, %v1708
      %v1721 = vpack.c.b16 %v1711, %v1710
      %v1722 = vpack.c.b16 %v1713, %v1712
      %v1723 = vpack.c.b16 %v1715, %v1714
      %1732 = vmatprep.subr.bf16.mxu0 0
      %1733 = vmatpush1.bf16.msra.mxu0 %v1716
      %1734 = vmatprep.subr.bf16.mxu0 0
      %1735 = vmatpush1.bf16.msra.mxu0 %v1717
      %1736 = vmatprep.subr.bf16.mxu0 0
      %1737 = vmatpush1.bf16.msra.mxu0 %v1718
      %1738 = vmatprep.subr.bf16.mxu0 0
      %1739 = vmatpush1.bf16.msra.mxu0 %v1719
      %1740 = vmatprep.subr.bf16.mxu0 0
      %1741 = vmatpush1.bf16.msra.mxu0 %v1720
      %1742 = vmatprep.subr.bf16.mxu0 0
      %1743 = vmatpush1.bf16.msra.mxu0 %v1721
      %1744 = vmatprep.subr.bf16.mxu0 0
      %1745 = vmatpush1.bf16.msra.mxu0 %v1722
      %1746 = vmatprep.subr.bf16.mxu0 0
      %1747 = vmatpush1.bf16.msra.mxu0 %v1723
      %1748 = vmatprep.subr.bf16.mxu0 0
      %1749 = vmatpush1.bf16.msra.mxu0 0
      %1750 = vmatprep.subr.bf16.mxu0 0
      %1751 = vmatpush1.bf16.msra.mxu0 0
      %1752 = vmatprep.subr.bf16.mxu0 0
      %1753 = vmatpush1.bf16.msra.mxu0 0
      %1754 = vmatprep.subr.bf16.mxu0 0
      %1755 = vmatpush1.bf16.msra.mxu0 0
      %1756 = vmatprep.subr.bf16.mxu0 0
      %1757 = vmatpush1.bf16.msra.mxu0 0
      %1758 = vmatprep.subr.bf16.mxu0 0
      %1759 = vmatpush1.bf16.msra.mxu0 0
      %1760 = vmatprep.subr.bf16.mxu0 0
      %1761 = vmatpush1.bf16.msra.mxu0 0
      %1762 = vmatprep.subr.bf16.mxu0 0
      %1763 = vmatpush1.bf16.msra.mxu0 0
      %1764 = vmatprep.mubr.bf16.mxu0 0
      %1765 = vmatmul.mubr.bf16.gmra.mrb[0].mxu0 %v1660
      %v1766 = vpop.f32.mrb[0].mxu0
      %v1767 = vadd.f32 %v1682, %v1766
      %v1768 = vpop.f32.mrb[0].mxu0
      %v1769 = vpop.f32.mrb[0].mxu0
      %v1770 = vadd.f32 %v1682, %v1769
      %v1771 = vpop.f32.mrb[0].mxu0
      %1772 = vdwg.mxu0
      %1773 = vmax.xlane.f32.xlu0 %v1767
      %v1774 = vpop.xlane.xlu0 %1773
      %1775 = vmax.xlane.f32.xlu0 %v1770
      %v1776 = vpop.xlane.xlu0 %1775
      %v1777 = vsub.f32 %v1767, %v1774
      %v1778 = vsub.f32 %v1770, %v1776
      %v1779 = vmul.f32 %v1777, 1.442695
      %v1780 = vpow.pop %v1779
      %v1781 = vmul.f32 %v1778, 1.442695
      %v1782 = vpow.pop %v1781
      %1783 = vadd.xlane.f32.xlu0 %v1780
      %v1784 = vpop.xlane.xlu0 %1783
      %1785 = vadd.xlane.f32.xlu0 %v1782
      %v1786 = vpop.xlane.xlu0 %1785
      %v1787 = vlog2.pop %v1784
      %v1788 = vmul.f32 %v1787, 0.6931472
      %v1789 = vlog2.pop %v1786
      %v1790 = vmul.f32 %v1789, 0.6931472
      %v1791 = vsub.f32 %v1777, %v1788
      %v1792 = vsub.f32 %v1778, %v1790
      %1793 = vst [vmem:[#allocation15] sm:$0xff] %v1791
      %1794 = vst [vmem:[#allocation15 + $0x8] sm:$0xff] %v1792
    $region69: #{tpu_custom_call.1} parent=1 // pred_fallthru
      _
    // Predicated region
    $region70: #{tpu_custom_call.1} parent=1 // pred_check
      _
    $region71: #{tpu_custom_call.1} parent=1 // pred_check_branch
      %1796 = sbr.rel (0) target = $region73
    $region72: #{tpu_custom_call.1} parent=1 // pred_region
      %s1798 = ssub.s32 256, 256
      %1799 = vsyncadd [#allocation6], %s1798
      %s1800 = sshll.u32 [#allocation15], 4
      %s1801 = int_to_ptr.vmem [resolvable:$true] %s1800
      %1806 = dma.vmem_to_hbm [thread:$0]  %s1801, 256, %s9, [#allocation6], 128, 128, 8
    $region73: #{tpu_custom_call.1} parent=1 // pred_fallthru
      _
    // Predicated region
    $region74: #{tpu_custom_call.1} parent=1 // pred_check
      _
    $region75: #{tpu_custom_call.1} parent=1 // pred_check_branch
      %1808 = sbr.rel (0) target = $region77
    $region76: #{tpu_custom_call.1} parent=1 // pred_region
      %1809 = dma.done [#allocation6], 256
    $region77: #{tpu_custom_call.1} parent=1 // pred_fallthru
      _
    %1810 = vsyncpa [#allocation5], 1
    %1811 = vsyncpa [#allocation8], 1
    %1812 = vsyncpa [#allocation11], 1
    %1813 = vsyncpa [#allocation14], 1
    %1814 = vsyncpa [#allocation6], 1

</llo_original>
